<compile_context>
chip_gen: v7x
topology: tpu7x:2x2x1
jax: 0.10.0
libtpu: 0.0.40
codegen_flags: <defaults>
</compile_context>

<pallas_src>
import functools
import math

import jax
import jax.numpy as jnp
from jax import lax
from jax.experimental import pallas as pl
from jax.experimental.pallas import tpu as pltpu

DROPOUT_P = 0.1      # dropout_p in the PyTorch module (undefined there; fixed here)


def _i32(u):
    """uint32 literal -> int32 constant with the identical bit pattern."""
    u &= 0xFFFFFFFF
    return jnp.int32(u - (1 << 32) if u >= (1 << 31) else u)


def _shr_logical(x, n):
    """Logical right shift on int32: arithmetic shift + mask of sign-extended bits."""
    return jnp.right_shift(x, n) & jnp.int32((1 << (32 - n)) - 1)


def _fmix32(x):
    """murmur3 finalizer, bit-exact in wrapping int32 arithmetic."""
    x = x ^ _shr_logical(x, 16)
    x = x * _i32(0x85EBCA6B)
    x = x ^ _shr_logical(x, 13)
    x = x * _i32(0xC2B2AE35)
    x = x ^ _shr_logical(x, 16)
    return x


def _attn_dropout_kernel(seed_ref, q_ref, k_ref, v_ref, o_ref, *,
                         scale, dropout_p, block_b, block_q):
    bi = pl.program_id(0)   # batch-block index
    qi = pl.program_id(1)   # S_q-tile index

    # Fold the softmax scale into q: block_q*D multiplies instead of block_q*S_k.
    q = q_ref[...] * jnp.asarray(scale, dtype=q_ref.dtype)      # (bt, tq, D)
    k = k_ref[...]                                              # (bt, Sk, D)
    v = v_ref[...]                                              # (bt, Sk, Dv)

    # q @ k^T: contract the D axis directly (no transpose materialization).
    s = lax.dot_general(q, k,
                        dimension_numbers=(((2,), (2,)), ((0,), (0,))),
                        preferred_element_type=jnp.float32)     # (bt, tq, Sk)

    # Numerically stable softmax over the last axis.
    m = jnp.max(s, axis=-1, keepdims=True)
    p = jnp.exp(s - m)
    denom = jnp.sum(p, axis=-1, keepdims=True)                  # (bt, tq, 1)

    if dropout_p > 0.0:
        # Fold inverted-dropout 1/(1-p) into the softmax normalizer (tiny per-row divide).
        inv = 1.0 / (denom * (1.0 - dropout_p))

        # Stateless counter-based RNG: hash of (seed, global batch, global row, col).
        # TODO(synk): not bit-identical to torch's Philox dropout stream (statistically
        # equivalent inverted dropout with the same keep probability).
        shape = s.shape
        b_ids = lax.broadcasted_iota(jnp.int32, shape, 0) + bi * block_b
        r_ids = lax.broadcasted_iota(jnp.int32, shape, 1) + qi * block_q
        c_ids = lax.broadcasted_iota(jnp.int32, shape, 2)
        h = (seed_ref[0]
             + b_ids * _i32(0x9E3779B1)
             + r_ids * _i32(0x85EBCA77)
             + c_ids * _i32(0xC2B2AE3D))
        h = _fmix32(h)
        r24 = h & jnp.int32(0x00FFFFFF)                          # uniform in [0, 2^24)
        keep = r24 >= jnp.int32(int(round(dropout_p * (1 << 24))))
        p = jnp.where(keep, p * inv, 0.0)
    else:
        p = p * (1.0 / denom)

    # output = dropout(softmax(scaled_qk)) @ value
    out = lax.dot_general(p.astype(v.dtype), v,
                          dimension_numbers=(((2,), (1,)), ((0,), (0,))),
                          preferred_element_type=jnp.float32)   # (bt, tq, Dv)
    o_ref[...] = out.astype(o_ref.dtype)


def attention_dropout(q2, k1, value, seed, *, dropout_p=DROPOUT_P,
                      block_b=None, block_q=None):
    B, S_q, D = q2.shape
    Bk, S_k, Dk = k1.shape
    Bv, S_kv, Dv = value.shape
    assert B == Bk == Bv and D == Dk and S_k == S_kv
    scale = 1.0 / math.sqrt(D)   # scale_factor (undefined global in the fuzz source)

    # Fat grid steps: full batch block + an S_q tile per step.
    if block_b is None:
        block_b = B
    if block_q is None:
        block_q = S_q
    if B % block_b != 0:
        block_b = B
    if S_q % block_q != 0 or block_q % 8 != 0:
        block_q = S_q
    grid = (B // block_b, S_q // block_q)

    # TODO(synk): for very long S_k or non-multiple-of-128 D/Dv, add flash-style S_k
    # tiling (online softmax) and pad the head dims to 128 in the wrapper.
    kernel = functools.partial(_attn_dropout_kernel, scale=scale, dropout_p=dropout_p,
                               block_b=block_b, block_q=block_q)

    return pl.pallas_call(
        kernel,
        out_shape=jax.ShapeDtypeStruct((B, S_q, Dv), q2.dtype),
        grid_spec=pltpu.PrefetchScalarGridSpec(
            num_scalar_prefetch=0,
            grid=grid,
            in_specs=[
                pl.BlockSpec(memory_space=pltpu.MemorySpace.SMEM),           # seed
                pl.BlockSpec((block_b, block_q, D), lambda bi, qi: (bi, qi, 0)),   # q2
                pl.BlockSpec((block_b, S_k, D), lambda bi, qi: (bi, 0, 0)),        # k1
                pl.BlockSpec((block_b, S_k, Dv), lambda bi, qi: (bi, 0, 0)),       # value
            ],
            out_specs=pl.BlockSpec((block_b, block_q, Dv), lambda bi, qi: (bi, qi, 0)),
        ),
        compiler_params=pltpu.CompilerParams(
            # Stateless per-element RNG -> iterations are independent; "parallel"
            # lets v7x shard the grid across both TensorCores (no-op on v5e/v6e).
            dimension_semantics=("parallel", "parallel"),
        ),
    )(jnp.asarray(seed, jnp.int32).reshape((1,)), q2, k1, value)


def _reference(q2, k1, value, scale):
    s = jnp.einsum("bqd,bkd->bqk", q2, k1,
                   precision=lax.Precision.HIGHEST) * scale
    p = jax.nn.softmax(s, axis=-1)
    return jnp.einsum("bqk,bkd->bqd", p, value,
                      precision=lax.Precision.HIGHEST)


if __name__ == "__main__":
    key = jax.random.PRNGKey(0)
    kq, kk, kv = jax.random.split(key, 3)

    # Small but lane-dense shapes (last dims multiples of 128 -> unmasked vld/vst).
    # The original fuzz-generated torch shapes were mutually inconsistent.
    B, S_q, S_k, D, Dv = 2, 256, 256, 128, 128

    q2 = jax.random.normal(kq, (B, S_q, D), dtype=jnp.float32)
    k1 = jax.random.normal(kk, (B, S_k, D), dtype=jnp.float32)
    value = jax.random.normal(kv, (B, S_k, Dv), dtype=jnp.float32)  # module-global `value`

    scale = 1.0 / math.sqrt(D)

    # Correctness check with dropout disabled (pure softmax attention).
    out_nodrop = attention_dropout(q2, k1, value, seed=0, dropout_p=0.0,
                                   block_b=B, block_q=128)
    ref = _reference(q2, k1, value, scale)
    max_err = float(jnp.max(jnp.abs(out_nodrop - ref)))
    assert jnp.allclose(out_nodrop, ref, atol=2e-2, rtol=2e-2), max_err

    # Forward pass with dropout (training semantics), as in the PyTorch module.
    out = attention_dropout(q2, k1, value, seed=1234, dropout_p=DROPOUT_P,
                            block_b=B, block_q=128)
    jax.block_until_ready(out)
    assert out.shape == (B, S_q, Dv)
    assert bool(jnp.all(jnp.isfinite(out)))
    print("KERNEL_OK")
</pallas_src>

<mosaic_0001>
module attributes {stable_mosaic.version = 11 : i64} {
  func.func @_attn_dropout_kernel(%arg0: i32, %arg1: i32, %arg2: memref<1xi32, #tpu.memory_space<smem>>, %arg3: memref<2x128x128xf32, #tpu.memory_space<vmem>>, %arg4: memref<2x256x128xf32, #tpu.memory_space<vmem>>, %arg5: memref<2x256x128xf32, #tpu.memory_space<vmem>>, %arg6: memref<2x128x128xf32, #tpu.memory_space<vmem>>) attributes {dimension_semantics = [#tpu.dimension_semantics<parallel>, #tpu.dimension_semantics<parallel>], iteration_bounds = array<i64: 1, 2>, scalar_prefetch = 0 : i64, scratch_operands = 0 : i64, tpu.core_type = #tpu.core_type<tc>, window_params = [{transform_indices = @transform_0, window_bounds = array<i64: 1>}, {transform_indices = @transform_1, window_bounds = array<i64: 2, 128, 128>}, {transform_indices = @transform_2, window_bounds = array<i64: 2, 256, 128>}, {transform_indices = @transform_3, window_bounds = array<i64: 2, 256, 128>}, {transform_indices = @transform_4, window_bounds = array<i64: 2, 128, 128>}]} {
    %c0 = arith.constant 0 : index
    %c0_0 = arith.constant 0 : index
    %c0_1 = arith.constant 0 : index
    %0 = vector.load %arg3[%c0, %c0_0, %c0_1] : memref<2x128x128xf32, #tpu.memory_space<vmem>>, vector<2x128x128xf32>
    %cst = arith.constant 0.0883883461 : f32
    %1 = vector.broadcast %cst : f32 to vector<2x128x128xf32>
    %2 = arith.mulf %0, %1 : vector<2x128x128xf32>
    %c0_2 = arith.constant 0 : index
    %c0_3 = arith.constant 0 : index
    %c0_4 = arith.constant 0 : index
    %3 = vector.load %arg4[%c0_2, %c0_3, %c0_4] : memref<2x256x128xf32, #tpu.memory_space<vmem>>, vector<2x256x128xf32>
    %c0_5 = arith.constant 0 : index
    %c0_6 = arith.constant 0 : index
    %c0_7 = arith.constant 0 : index
    %4 = vector.load %arg5[%c0_5, %c0_6, %c0_7] : memref<2x256x128xf32, #tpu.memory_space<vmem>>, vector<2x256x128xf32>
    %cst_8 = arith.constant dense<0.000000e+00> : vector<2x128x256xf32>
    %5 = tpu.matmul %2, %3, %cst_8 {dimension_numbers = #tpu.dot_dimension_numbers<[2], [2], [1], [1], [0, 0, 0, 1, 1, 1], [0], [0]>} : vector<2x128x128xf32>, vector<2x256x128xf32>, vector<2x128x256xf32> -> vector<2x128x256xf32>
    %cst_9 = arith.constant dense<0xFF800000> : vector<2x128xf32>
    %6 = vector.multi_reduction <maximumf>, %5, %cst_9 [2] : vector<2x128x256xf32> to vector<2x128xf32>
    %7 = vector.shape_cast %6 : vector<2x128xf32> to vector<2x128x1xf32>
    %8 = vector.broadcast %7 : vector<2x128x1xf32> to vector<2x128x256xf32>
    %9 = arith.subf %5, %8 : vector<2x128x256xf32>
    %10 = math.exp %9 : vector<2x128x256xf32>
    %cst_10 = arith.constant dense<0.000000e+00> : vector<2x128xf32>
    %11 = vector.multi_reduction <add>, %10, %cst_10 [2] : vector<2x128x256xf32> to vector<2x128xf32>
    %12 = vector.shape_cast %11 : vector<2x128xf32> to vector<2x128x1xf32>
    %cst_11 = arith.constant 1.000000e+00 : f32
    %13 = vector.broadcast %cst_11 : f32 to vector<2x128x1xf32>
    %14 = arith.divf %13, %12 : vector<2x128x1xf32>
    %15 = vector.broadcast %14 : vector<2x128x1xf32> to vector<2x128x256xf32>
    %16 = arith.mulf %10, %15 : vector<2x128x256xf32>
    %cst_12 = arith.constant dense<0.000000e+00> : vector<2x128x128xf32>
    %17 = tpu.matmul %16, %4, %cst_12 {dimension_numbers = #tpu.dot_dimension_numbers<[2], [1], [1], [2], [0, 0, 0, 1, 1, 2], [0], [0]>} : vector<2x128x256xf32>, vector<2x256x128xf32>, vector<2x128x128xf32> -> vector<2x128x128xf32>
    %c0_13 = arith.constant 0 : index
    %c0_14 = arith.constant 0 : index
    %c0_15 = arith.constant 0 : index
    %18 = vector.load %arg6[%c0_13, %c0_14, %c0_15] : memref<2x128x128xf32, #tpu.memory_space<vmem>>, vector<2x128x128xf32>
    tpu.vector_store %arg6[%c0_13, %c0_14, %c0_15], %17 {strides = array<i32>} : memref<2x128x128xf32, #tpu.memory_space<vmem>>, vector<2x128x128xf32>,
    return
  }
  func.func @transform_0(%arg0: i32, %arg1: i32) -> i32 {
    %c0_i32 = arith.constant 0 : i32
    %c0_i32_0 = arith.constant 0 : i32
    return %c0_i32 : i32
  }
  func.func @transform_1(%arg0: i32, %arg1: i32) -> (i32, i32, i32) {
    %c0_i32 = arith.constant 0 : i32
    %c0_i32_0 = arith.constant 0 : i32
    return %arg0, %arg1, %c0_i32 : i32, i32, i32
  }
  func.func @transform_2(%arg0: i32, %arg1: i32) -> (i32, i32, i32) {
    %c0_i32 = arith.constant 0 : i32
    %c0_i32_0 = arith.constant 0 : i32
    %c0_i32_1 = arith.constant 0 : i32
    return %arg0, %c0_i32, %c0_i32_0 : i32, i32, i32
  }
  func.func @transform_3(%arg0: i32, %arg1: i32) -> (i32, i32, i32) {
    %c0_i32 = arith.constant 0 : i32
    %c0_i32_0 = arith.constant 0 : i32
    %c0_i32_1 = arith.constant 0 : i32
    return %arg0, %c0_i32, %c0_i32_0 : i32, i32, i32
  }
  func.func @transform_4(%arg0: i32, %arg1: i32) -> (i32, i32, i32) {
    %c0_i32 = arith.constant 0 : i32
    %c0_i32_0 = arith.constant 0 : i32
    return %arg0, %arg1, %c0_i32 : i32, i32, i32
  }
}

</mosaic_0001>

<llo_original>
// kernel: tpu_custom_call.1
$region0: #{tpu_custom_call.1}
  #allocation0 [shape = 'u32[]', space=smem, size = 0x4, offset = 0x4, fixed_abs, tag = 'smem constant byte address 0x4 - core index']
  #allocation1 [shape = 'u32[144,128]{1,0:T(1,128)}', space=vmem, size = 0x12000, scoped, tag = 'internal scratch']
  #allocation2 [shape = 's32[1]{0:T(128)S(6)}', space=smem, size = 0x200, scoped, tag = 'scoped memory for tpu_custom_call.1']
  #allocation10 [shape = 's32[]', space=sflag, size = 0x4, offset = 0, fixed_abs, tag = 'sflag constant byte address 0x0 - dummy sync flag']
  #allocation12 [shape = 's32[]', space=sflag, size = 0x4, offset = 0, fixed_abs, tag = 'sflag constant byte address 0x0 - dummy sync flag']
  %s0 = inlined_call_operand.<no memory space> [shape: s32[1], index: 0, kind: input, shape index: {}]
  %s1 = inlined_call_operand.hbm [shape: f32[2,256,128], index: 1, kind: input, shape index: {}]
  %s2 = inlined_call_operand.hbm [shape: f32[2,256,128], index: 2, kind: input, shape index: {}]
  %s3 = inlined_call_operand.hbm [shape: f32[2,256,128], index: 3, kind: input, shape index: {}]
  %s4 = inlined_call_operand.hbm [shape: f32[2,256,128], index: 4, kind: output, shape index: {}]
  %s5 = sld [smem:[#allocation0]]
  $region61: #{tpu_custom_call.1} parent=0
    _
  %s7 = ssub.s32 1, %s5
  %s8 = scalar_select 0, %s7, %s5
  %9 = sst [smem:[#allocation2]] %s0
  $region1: #{tpu_custom_call.1} parent=0
    #allocation3 [shape = 'u8[262144]{0}', space=vmem, size = 0x40000, scoped, tag = 'input window, operand 1']
    #allocation4 [shape = 's32[2]{0}', space=sflag, size = 0x8, scoped, tag = 'scoped memory for tpu_custom_call.1']
    #allocation5 [shape = 's32[2]{0}', space=sflag, size = 0x8, scoped, tag = 'scoped memory for tpu_custom_call.1']
    #allocation6 [shape = 'u8[262144]{0}', space=vmem, size = 0x40000, scoped, tag = 'input window, operand 2, single buffered']
    #allocation7 [shape = 's32[1]{0}', space=sflag, size = 0x4, scoped, tag = 'scoped memory for tpu_custom_call.1']
    #allocation8 [shape = 'u8[262144]{0}', space=vmem, size = 0x40000, scoped, tag = 'input window, operand 3, single buffered']
    #allocation9 [shape = 'u8[262144]{0}', space=vmem, size = 0x40000, scoped, tag = 'output window, operand 0']
    %10 = vsyncpa [#allocation4], 0
    %s11 = scalar_lea.sflag [#allocation4], 1
    %12 = vsyncpa %s11, 0
    %13 = vsyncpa [#allocation7], 0
    %14 = vsyncpa [#allocation5], 0
    %s15 = scalar_lea.sflag [#allocation5], 1
    %16 = vsyncpa %s15, 0
    loop: start=0, step=1, limit=4
    $region2: #{tpu_custom_call.1} parent=1 // loop_pre_header
      _
    $region3: #{tpu_custom_call.1} parent=1 // loop_header
      %s18 = sphi 0, %s22
      %p19 = scmp.ge.s32.totalorder %s18, 4
      %s25 = sphi 0, %s37
      %s26 = sphi 0, %s33
      %s27 = sphi 0, %s25
      %s28 = sphi 0, %s26
      %s29 = sphi 0, %s27
      %s30 = sphi 0, %s28
      %s38 = sphi 0, %s38
      %s40 = sphi 0, %s38
      %s41 = sphi 0, %s40
      %s55 = sphi 0, %s41
      %s63 = sphi 0, %s65
      %s66 = sphi 0, %s63
      %s67 = sphi 0, %s66
      %s83 = sphi 0, %s67
      %s89 = sphi 0, %s91
      %s92 = sphi 0, %s89
      %s93 = sphi 0, %s92
      %s109 = sphi 0, %s93
      %s115 = sphi 0, %s117
      %s118 = sphi 0, %s115
      %s119 = sphi 0, %s118
      %s135 = sphi 0, %s119
      %s143 = sphi 0, %s145
      %s146 = sphi 0, %s143
      %s147 = sphi 0, %s146
      %s163 = sphi 0, %s147
    $region4: #{tpu_custom_call.1} parent=1 // loop_header_branch
      %21 = sbr.rel (%p19) target = $region8
    $region5: #{tpu_custom_call.1} parent=1 // loop_body
      %s23 = ssub.s32 %s18, 1
      %s24 = ssub.s32 %s18, 2
      %s31 = sadd.s32 1, %s26
      %p32 = scmp.ge.s32.totalorder %s31, 2
      %s33 = scalar_select %p32, 0, %s31
      %s34 = sadd.s32 1, %s25
      %s35 = scalar_select %p32, %s34, %s25
      %p36 = scmp.ge.s32.totalorder %s35, 1
      %s37 = scalar_select %p36, 0, %s35
      %s39 = sadd.s32 %s38, 1
      %p42 = scmp.eq.s32.totalorder %s18, 1
      %p43 = scmp.ne.s32.totalorder %s38, %s40
      %p44 = scmp.eq.s32.totalorder %s18, 0
      %p45 = por %p43, %p44
      %p46 = scmp.ne.s32.totalorder %s38, %s40
      %p47 = scmp.eq.s32.totalorder %s23, 1
      %p48 = por %p46, %p47
      %p49 = scmp.ne.s32.totalorder %s40, %s41
      %p50 = scmp.eq.s32.totalorder %s23, 0
      %p51 = por %p49, %p50
      %p52 = scmp.ne.s32.totalorder %s40, %s41
      %p53 = scmp.eq.s32.totalorder %s24, 1
      %p54 = por %p52, %p53
      %p56 = scmp.ne.s32.totalorder %s41, %s55
      %p57 = scmp.eq.s32.totalorder %s24, 0
      %p58 = por %p56, %p57
      %s59 = ssub.s32 %s25, %s37
      %s60 = ssub.s32 %s26, %s33
      %s61 = sor.u32 %s59, %s60
      %p62 = scmp.eq.s32.totalorder %s61, 0
      %s64 = sadd.s32 %s63, 1
      %s65 = scalar_select %p62, %s63, %s64
      %p68 = pneg %p62
      %p69 = scmp.eq.s32.totalorder %s18, 1
      %p70 = por %p68, %p69
      %p71 = scmp.ne.s32.totalorder %s63, %s66
      %p72 = scmp.eq.s32.totalorder %s18, 0
      %p73 = por %p71, %p72
      %p74 = scmp.ne.s32.totalorder %s63, %s66
      %p75 = scmp.eq.s32.totalorder %s23, 1
      %p76 = por %p74, %p75
      %p77 = scmp.ne.s32.totalorder %s66, %s67
      %p78 = scmp.eq.s32.totalorder %s23, 0
      %p79 = por %p77, %p78
      %p80 = scmp.ne.s32.totalorder %s66, %s67
      %p81 = scmp.eq.s32.totalorder %s24, 1
      %p82 = por %p80, %p81
      %p84 = scmp.ne.s32.totalorder %s67, %s83
      %p85 = scmp.eq.s32.totalorder %s24, 0
      %p86 = por %p84, %p85
      %s87 = ssub.s32 %s25, %s37
      %p88 = scmp.eq.s32.totalorder %s87, 0
      %s90 = sadd.s32 %s89, 1
      %s91 = scalar_select %p88, %s89, %s90
      %p94 = pneg %p88
      %p95 = scmp.eq.s32.totalorder %s18, 1
      %p96 = por %p94, %p95
      %p97 = scmp.ne.s32.totalorder %s89, %s92
      %p98 = scmp.eq.s32.totalorder %s18, 0
      %p99 = por %p97, %p98
      %p100 = scmp.ne.s32.totalorder %s89, %s92
      %p101 = scmp.eq.s32.totalorder %s23, 1
      %p102 = por %p100, %p101
      %p103 = scmp.ne.s32.totalorder %s92, %s93
      %p104 = scmp.eq.s32.totalorder %s23, 0
      %p105 = por %p103, %p104
      %p106 = scmp.ne.s32.totalorder %s92, %s93
      %p107 = scmp.eq.s32.totalorder %s24, 1
      %p108 = por %p106, %p107
      %p110 = scmp.ne.s32.totalorder %s93, %s109
      %p111 = scmp.eq.s32.totalorder %s24, 0
      %p112 = por %p110, %p111
      %s113 = ssub.s32 %s25, %s37
      %p114 = scmp.eq.s32.totalorder %s113, 0
      %s116 = sadd.s32 %s115, 1
      %s117 = scalar_select %p114, %s115, %s116
      %p120 = pneg %p114
      %p121 = scmp.eq.s32.totalorder %s18, 1
      %p122 = por %p120, %p121
      %p123 = scmp.ne.s32.totalorder %s115, %s118
      %p124 = scmp.eq.s32.totalorder %s18, 0
      %p125 = por %p123, %p124
      %p126 = scmp.ne.s32.totalorder %s115, %s118
      %p127 = scmp.eq.s32.totalorder %s23, 1
      %p128 = por %p126, %p127
      %p129 = scmp.ne.s32.totalorder %s118, %s119
      %p130 = scmp.eq.s32.totalorder %s23, 0
      %p131 = por %p129, %p130
      %p132 = scmp.ne.s32.totalorder %s118, %s119
      %p133 = scmp.eq.s32.totalorder %s24, 1
      %p134 = por %p132, %p133
      %p136 = scmp.ne.s32.totalorder %s119, %s135
      %p137 = scmp.eq.s32.totalorder %s24, 0
      %p138 = por %p136, %p137
      %s139 = ssub.s32 %s25, %s37
      %s140 = ssub.s32 %s26, %s33
      %s141 = sor.u32 %s139, %s140
      %p142 = scmp.eq.s32.totalorder %s141, 0
      %s144 = sadd.s32 %s143, 1
      %s145 = scalar_select %p142, %s143, %s144
      %p148 = pneg %p142
      %p149 = scmp.eq.s32.totalorder %s18, 1
      %p150 = por %p148, %p149
      %p151 = scmp.ne.s32.totalorder %s143, %s146
      %p152 = scmp.eq.s32.totalorder %s18, 0
      %p153 = por %p151, %p152
      %p154 = scmp.ne.s32.totalorder %s143, %s146
      %p155 = scmp.eq.s32.totalorder %s23, 1
      %p156 = por %p154, %p155
      %p157 = scmp.ne.s32.totalorder %s146, %s147
      %p158 = scmp.eq.s32.totalorder %s23, 0
      %p159 = por %p157, %p158
      %p160 = scmp.ne.s32.totalorder %s146, %s147
      %p161 = scmp.eq.s32.totalorder %s24, 1
      %p162 = por %p160, %p161
      %p164 = scmp.ne.s32.totalorder %s147, %s163
      %p165 = scmp.eq.s32.totalorder %s24, 0
      %p166 = por %p164, %p165
      %p167 = scmp.le.s32.totalorder 1, %s18
      %p168 = scmp.lt.s32.totalorder %s18, 3
      %p169 = pnand %p167, %p168
      %p170 = pneg %p169
      // Predicated region
      $region9: #{tpu_custom_call.1} parent=5 // pred_check
        _
      $region10: #{tpu_custom_call.1} parent=5 // pred_check_branch
        %172 = sbr.rel (%p169) target = $region12
      $region11: #{tpu_custom_call.1} parent=5 // pred_region
        %s173 = ssub.s32 %s18, 1
        // Predicated region
        $region13: #{tpu_custom_call.1} parent=11 // pred_check
          %p174 = pneg %p51
        $region14: #{tpu_custom_call.1} parent=11 // pred_check_branch
          %176 = sbr.rel (%p174) target = $region16
        $region15: #{tpu_custom_call.1} parent=11 // pred_region
          _
        $region16: #{tpu_custom_call.1} parent=11 // pred_fallthru
          _
        // Predicated region
        $region17: #{tpu_custom_call.1} parent=11 // pred_check
          %p177 = pneg %p105
        $region18: #{tpu_custom_call.1} parent=11 // pred_check_branch
          %179 = sbr.rel (%p177) target = $region20
        $region19: #{tpu_custom_call.1} parent=11 // pred_region
          %s180 = smul.u32 2, %s27
          %s182 = ssub.s32 8192, 8192
          %183 = vsyncadd [#allocation7], %s182
          %s184 = smul.addr %s180, 32
          %s185 = smul.addr %s184, 128
          %s186 = scalar_lea.hbm %s2, %s185
          %s187 = sshll.u32 [#allocation6], 4
          %s188 = int_to_ptr.vmem [resolvable:$true] %s187
          %193 = dma.hbm_to_vmem [thread:$0]  %s186, 8192, %s188, [#allocation7], 128, 128, 8
        $region20: #{tpu_custom_call.1} parent=11 // pred_fallthru
          _
        // Predicated region
        $region21: #{tpu_custom_call.1} parent=11 // pred_check
          %p194 = pneg %p131
        $region22: #{tpu_custom_call.1} parent=11 // pred_check_branch
          %196 = sbr.rel (%p194) target = $region24
        $region23: #{tpu_custom_call.1} parent=11 // pred_region
          %s197 = smul.u32 2, %s27
          %s199 = ssub.s32 8192, 8192
          %200 = vsyncadd [#allocation7], %s199
          %s201 = smul.addr %s197, 32
          %s202 = smul.addr %s201, 128
          %s203 = scalar_lea.hbm %s3, %s202
          %s204 = sshll.u32 [#allocation8], 4
          %s205 = int_to_ptr.vmem [resolvable:$true] %s204
          %210 = dma.hbm_to_vmem [thread:$0]  %s203, 8192, %s205, [#allocation7], 128, 128, 8
        $region24: #{tpu_custom_call.1} parent=11 // pred_fallthru
          _
      $region12: #{tpu_custom_call.1} parent=5 // pred_fallthru
        _
      %p211 = scmp.lt.s32.totalorder %s18, 2
      // Predicated region
      $region25: #{tpu_custom_call.1} parent=5 // pred_check
        %p212 = pneg %p211
      $region26: #{tpu_custom_call.1} parent=5 // pred_check_branch
        %214 = sbr.rel (%p212) target = $region28
      $region27: #{tpu_custom_call.1} parent=5 // pred_region
        // Predicated region
        $region29: #{tpu_custom_call.1} parent=27 // pred_check
          %p215 = pneg %p73
        $region30: #{tpu_custom_call.1} parent=27 // pred_check_branch
          %217 = sbr.rel (%p215) target = $region32
        $region31: #{tpu_custom_call.1} parent=27 // pred_region
          #allocation11 [shape = 'u32[6]{0}', space=smem, size = 0x18, scoped, tag = 'DMA stride descriptor']
          %s218 = sand.u32 %s63, 1
          %s219 = scalar_lea.sflag [#allocation4], %s218
          %s220 = sand.u32 %s63, 1
          %s221 = smul.addr %s220, 256
          %s222 = scalar_lea.vmem [#allocation3], %s221
          %s223 = smul.u32 2, %s25
          %s224 = smul.u32 16, %s26
          %s226 = ssub.s32 4096, 4096
          %227 = vsyncadd %s219, %s226
          %s228 = smul.addr %s223, 32
          %s229 = sadd.s32 %s224, %s228
          %s230 = smul.addr %s229, 128
          %s231 = scalar_lea.hbm %s1, %s230
          %s233 = sshll.u32 1, 14
          %s234 = sxor.u32 4294967295, %s233
          %s236 = sld [smem:[#allocation0]]
          %s237 = sadd.s32 2, %s236
          %s239 = sshll.u32 7, 26
          %s240 = sxor.u32 4294967295, %s239
          %s241 = sand.u32 0, %s240
          %s242 = sshll.u32 %s237, 26
          %s243 = sor.u32 %s241, %s242
          %s244 = sshll.u32 %s222, 4
          %s245 = int_to_ptr.vmem [resolvable:$true] %s244
          %251 = sst [smem:[#allocation11]] 4096
          %s252 = scalar_lea.smem [#allocation11], 1
          %253 = sst [smem:[%s252]] 2048
          %s254 = scalar_lea.smem [#allocation11], 2
          %255 = sst [smem:[%s254]] 16
          %s256 = scalar_lea.smem [#allocation11], 3
          %257 = sst [smem:[%s256]] 128
          %s258 = scalar_lea.smem [#allocation11], 4
          %259 = sst [smem:[%s258]] 128
          %s260 = scalar_lea.smem [#allocation11], 5
          %261 = sst [smem:[%s260]] 8
          %263 = dma.general %s231, 4096, %s245, %s219, [#allocation10], [#allocation11], %s243, 0
        $region32: #{tpu_custom_call.1} parent=27 // pred_fallthru
          _
      $region28: #{tpu_custom_call.1} parent=5 // pred_fallthru
        _
      %p264 = scmp.le.s32.totalorder 1, %s18
      %p265 = scmp.lt.s32.totalorder %s18, 3
      %p266 = pnand %p264, %p265
      %p267 = pneg %p266
      // Predicated region
      $region33: #{tpu_custom_call.1} parent=5 // pred_check
        _
      $region34: #{tpu_custom_call.1} parent=5 // pred_check_branch
        %269 = sbr.rel (%p266) target = $region36
      $region35: #{tpu_custom_call.1} parent=5 // pred_region
        %s270 = ssub.s32 %s18, 1
        %s271 = sand.u32 %s66, 1
        %s272 = scalar_lea.sflag [#allocation4], %s271
        %s273 = sand.u32 %s66, 1
        %s274 = smul.addr %s273, 256
        %s275 = scalar_lea.vmem [#allocation3], %s274
        // Predicated region
        $region37: #{tpu_custom_call.1} parent=35 // pred_check
          %p276 = pneg %p79
        $region38: #{tpu_custom_call.1} parent=35 // pred_check_branch
          %278 = sbr.rel (%p276) target = $region40
        $region39: #{tpu_custom_call.1} parent=35 // pred_region
          %279 = dma.done %s272, 4096
        $region40: #{tpu_custom_call.1} parent=35 // pred_fallthru
          _
        // Predicated region
        $region41: #{tpu_custom_call.1} parent=35 // pred_check
          %p280 = pneg %p105
        $region42: #{tpu_custom_call.1} parent=35 // pred_check_branch
          %282 = sbr.rel (%p280) target = $region44
        $region43: #{tpu_custom_call.1} parent=35 // pred_region
          %283 = dma.done [#allocation7], 8192
        $region44: #{tpu_custom_call.1} parent=35 // pred_fallthru
          _
        // Predicated region
        $region45: #{tpu_custom_call.1} parent=35 // pred_check
          %p284 = pneg %p131
        $region46: #{tpu_custom_call.1} parent=35 // pred_check_branch
          %286 = sbr.rel (%p284) target = $region48
        $region47: #{tpu_custom_call.1} parent=35 // pred_region
          %287 = dma.done [#allocation7], 8192
        $region48: #{tpu_custom_call.1} parent=35 // pred_fallthru
          _
        %p288 = pneg %p51
        %p289 = pneg %p48
        %s290 = sand.u32 %s66, 1
        %s291 = scalar_lea.sflag [#allocation4], %s290
        %s292 = sand.u32 %s66, 1
        %s293 = smul.addr %s292, 256
        %s294 = scalar_lea.vmem [#allocation3], %s293
        %p295 = pneg %p79
        %p296 = pneg %p76
        %p297 = pneg %p105
        %p298 = pneg %p102
        %p299 = pneg %p131
        %p300 = pneg %p128
        %p301 = pneg %p159
        %p302 = pneg %p156
        %s303 = sand.u32 %s146, 1
        %s304 = scalar_lea.sflag [#allocation5], %s303
        %s305 = sand.u32 %s146, 1
        %s306 = smul.addr %s305, 256
        %s307 = scalar_lea.vmem [#allocation9], %s306
        %s308 = smul.u32 2, %s27
        %s309 = smul.u32 16, %s28
        %s310 = smul.u32 2, %s27
        %s311 = smul.u32 2, %s27
        %s312 = smul.u32 2, %s27
        %s313 = smul.u32 16, %s28
        %v314 = vld [vmem:[%s275] sm:$0xff]
        %v315 = vld [vmem:[%s275 + $0x8] sm:$0xff]
        %v316 = vld [vmem:[%s275 + $0x10] sm:$0xff]
        %v317 = vld [vmem:[%s275 + $0x18] sm:$0xff]
        %v318 = vld [vmem:[%s275 + $0x20] sm:$0xff]
        %v319 = vld [vmem:[%s275 + $0x28] sm:$0xff]
        %v320 = vld [vmem:[%s275 + $0x30] sm:$0xff]
        %v321 = vld [vmem:[%s275 + $0x38] sm:$0xff]
        %v322 = vld [vmem:[%s275 + $0x40] sm:$0xff]
        %v323 = vld [vmem:[%s275 + $0x48] sm:$0xff]
        %v324 = vld [vmem:[%s275 + $0x50] sm:$0xff]
        %v325 = vld [vmem:[%s275 + $0x58] sm:$0xff]
        %v326 = vld [vmem:[%s275 + $0x60] sm:$0xff]
        %v327 = vld [vmem:[%s275 + $0x68] sm:$0xff]
        %v328 = vld [vmem:[%s275 + $0x70] sm:$0xff]
        %v329 = vld [vmem:[%s275 + $0x78] sm:$0xff]
        %v330 = vld [vmem:[%s275 + $0x80] sm:$0xff]
        %v331 = vld [vmem:[%s275 + $0x88] sm:$0xff]
        %v332 = vld [vmem:[%s275 + $0x90] sm:$0xff]
        %v333 = vld [vmem:[%s275 + $0x98] sm:$0xff]
        %v334 = vld [vmem:[%s275 + $0xa0] sm:$0xff]
        %v335 = vld [vmem:[%s275 + $0xa8] sm:$0xff]
        %v336 = vld [vmem:[%s275 + $0xb0] sm:$0xff]
        %v337 = vld [vmem:[%s275 + $0xb8] sm:$0xff]
        %v338 = vld [vmem:[%s275 + $0xc0] sm:$0xff]
        %v339 = vld [vmem:[%s275 + $0xc8] sm:$0xff]
        %v340 = vld [vmem:[%s275 + $0xd0] sm:$0xff]
        %v341 = vld [vmem:[%s275 + $0xd8] sm:$0xff]
        %v342 = vld [vmem:[%s275 + $0xe0] sm:$0xff]
        %v343 = vld [vmem:[%s275 + $0xe8] sm:$0xff]
        %v344 = vld [vmem:[%s275 + $0xf0] sm:$0xff]
        %v345 = vld [vmem:[%s275 + $0xf8] sm:$0xff]
        %v346 = vmul.f32 %v314, 0.088388346
        %v347 = vmul.f32 %v315, 0.088388346
        %v348 = vmul.f32 %v316, 0.088388346
        %v349 = vmul.f32 %v317, 0.088388346
        %v350 = vmul.f32 %v318, 0.088388346
        %v351 = vmul.f32 %v319, 0.088388346
        %v352 = vmul.f32 %v320, 0.088388346
        %v353 = vmul.f32 %v321, 0.088388346
        %v354 = vmul.f32 %v322, 0.088388346
        %v355 = vmul.f32 %v323, 0.088388346
        %v356 = vmul.f32 %v324, 0.088388346
        %v357 = vmul.f32 %v325, 0.088388346
        %v358 = vmul.f32 %v326, 0.088388346
        %v359 = vmul.f32 %v327, 0.088388346
        %v360 = vmul.f32 %v328, 0.088388346
        %v361 = vmul.f32 %v329, 0.088388346
        %v362 = vmul.f32 %v330, 0.088388346
        %v363 = vmul.f32 %v331, 0.088388346
        %v364 = vmul.f32 %v332, 0.088388346
        %v365 = vmul.f32 %v333, 0.088388346
        %v366 = vmul.f32 %v334, 0.088388346
        %v367 = vmul.f32 %v335, 0.088388346
        %v368 = vmul.f32 %v336, 0.088388346
        %v369 = vmul.f32 %v337, 0.088388346
        %v370 = vmul.f32 %v338, 0.088388346
        %v371 = vmul.f32 %v339, 0.088388346
        %v372 = vmul.f32 %v340, 0.088388346
        %v373 = vmul.f32 %v341, 0.088388346
        %v374 = vmul.f32 %v342, 0.088388346
        %v375 = vmul.f32 %v343, 0.088388346
        %v376 = vmul.f32 %v344, 0.088388346
        %v377 = vmul.f32 %v345, 0.088388346
        %v378 = vld [vmem:[#allocation6] sm:$0xff]
        %v379 = vld [vmem:[#allocation6 + $0x8] sm:$0xff]
        %v380 = vld [vmem:[#allocation6 + $0x10] sm:$0xff]
        %v381 = vld [vmem:[#allocation6 + $0x18] sm:$0xff]
        %v382 = vld [vmem:[#allocation6 + $0x20] sm:$0xff]
        %v383 = vld [vmem:[#allocation6 + $0x28] sm:$0xff]
        %v384 = vld [vmem:[#allocation6 + $0x30] sm:$0xff]
        %v385 = vld [vmem:[#allocation6 + $0x38] sm:$0xff]
        %v386 = vld [vmem:[#allocation6 + $0x40] sm:$0xff]
        %v387 = vld [vmem:[#allocation6 + $0x48] sm:$0xff]
        %v388 = vld [vmem:[#allocation6 + $0x50] sm:$0xff]
        %v389 = vld [vmem:[#allocation6 + $0x58] sm:$0xff]
        %v390 = vld [vmem:[#allocation6 + $0x60] sm:$0xff]
        %v391 = vld [vmem:[#allocation6 + $0x68] sm:$0xff]
        %v392 = vld [vmem:[#allocation6 + $0x70] sm:$0xff]
        %v393 = vld [vmem:[#allocation6 + $0x78] sm:$0xff]
        %v394 = vld [vmem:[#allocation6 + $0x80] sm:$0xff]
        %v395 = vld [vmem:[#allocation6 + $0x88] sm:$0xff]
        %v396 = vld [vmem:[#allocation6 + $0x90] sm:$0xff]
        %v397 = vld [vmem:[#allocation6 + $0x98] sm:$0xff]
        %v398 = vld [vmem:[#allocation6 + $0xa0] sm:$0xff]
        %v399 = vld [vmem:[#allocation6 + $0xa8] sm:$0xff]
        %v400 = vld [vmem:[#allocation6 + $0xb0] sm:$0xff]
        %v401 = vld [vmem:[#allocation6 + $0xb8] sm:$0xff]
        %v402 = vld [vmem:[#allocation6 + $0xc0] sm:$0xff]
        %v403 = vld [vmem:[#allocation6 + $0xc8] sm:$0xff]
        %v404 = vld [vmem:[#allocation6 + $0xd0] sm:$0xff]
        %v405 = vld [vmem:[#allocation6 + $0xd8] sm:$0xff]
        %v406 = vld [vmem:[#allocation6 + $0xe0] sm:$0xff]
        %v407 = vld [vmem:[#allocation6 + $0xe8] sm:$0xff]
        %v408 = vld [vmem:[#allocation6 + $0xf0] sm:$0xff]
        %v409 = vld [vmem:[#allocation6 + $0xf8] sm:$0xff]
        %v410 = vld [vmem:[#allocation6 + $0x100] sm:$0xff]
        %v411 = vld [vmem:[#allocation6 + $0x108] sm:$0xff]
        %v412 = vld [vmem:[#allocation6 + $0x110] sm:$0xff]
        %v413 = vld [vmem:[#allocation6 + $0x118] sm:$0xff]
        %v414 = vld [vmem:[#allocation6 + $0x120] sm:$0xff]
        %v415 = vld [vmem:[#allocation6 + $0x128] sm:$0xff]
        %v416 = vld [vmem:[#allocation6 + $0x130] sm:$0xff]
        %v417 = vld [vmem:[#allocation6 + $0x138] sm:$0xff]
        %v418 = vld [vmem:[#allocation6 + $0x140] sm:$0xff]
        %v419 = vld [vmem:[#allocation6 + $0x148] sm:$0xff]
        %v420 = vld [vmem:[#allocation6 + $0x150] sm:$0xff]
        %v421 = vld [vmem:[#allocation6 + $0x158] sm:$0xff]
        %v422 = vld [vmem:[#allocation6 + $0x160] sm:$0xff]
        %v423 = vld [vmem:[#allocation6 + $0x168] sm:$0xff]
        %v424 = vld [vmem:[#allocation6 + $0x170] sm:$0xff]
        %v425 = vld [vmem:[#allocation6 + $0x178] sm:$0xff]
        %v426 = vld [vmem:[#allocation6 + $0x180] sm:$0xff]
        %v427 = vld [vmem:[#allocation6 + $0x188] sm:$0xff]
        %v428 = vld [vmem:[#allocation6 + $0x190] sm:$0xff]
        %v429 = vld [vmem:[#allocation6 + $0x198] sm:$0xff]
        %v430 = vld [vmem:[#allocation6 + $0x1a0] sm:$0xff]
        %v431 = vld [vmem:[#allocation6 + $0x1a8] sm:$0xff]
        %v432 = vld [vmem:[#allocation6 + $0x1b0] sm:$0xff]
        %v433 = vld [vmem:[#allocation6 + $0x1b8] sm:$0xff]
        %v434 = vld [vmem:[#allocation6 + $0x1c0] sm:$0xff]
        %v435 = vld [vmem:[#allocation6 + $0x1c8] sm:$0xff]
        %v436 = vld [vmem:[#allocation6 + $0x1d0] sm:$0xff]
        %v437 = vld [vmem:[#allocation6 + $0x1d8] sm:$0xff]
        %v438 = vld [vmem:[#allocation6 + $0x1e0] sm:$0xff]
        %v439 = vld [vmem:[#allocation6 + $0x1e8] sm:$0xff]
        %v440 = vld [vmem:[#allocation6 + $0x1f0] sm:$0xff]
        %v441 = vld [vmem:[#allocation6 + $0x1f8] sm:$0xff]
        %v442 = vld [vmem:[#allocation8] sm:$0xff]
        %v443 = vld [vmem:[#allocation8 + $0x8] sm:$0xff]
        %v444 = vld [vmem:[#allocation8 + $0x10] sm:$0xff]
        %v445 = vld [vmem:[#allocation8 + $0x18] sm:$0xff]
        %v446 = vld [vmem:[#allocation8 + $0x20] sm:$0xff]
        %v447 = vld [vmem:[#allocation8 + $0x28] sm:$0xff]
        %v448 = vld [vmem:[#allocation8 + $0x30] sm:$0xff]
        %v449 = vld [vmem:[#allocation8 + $0x38] sm:$0xff]
        %v450 = vld [vmem:[#allocation8 + $0x40] sm:$0xff]
        %v451 = vld [vmem:[#allocation8 + $0x48] sm:$0xff]
        %v452 = vld [vmem:[#allocation8 + $0x50] sm:$0xff]
        %v453 = vld [vmem:[#allocation8 + $0x58] sm:$0xff]
        %v454 = vld [vmem:[#allocation8 + $0x60] sm:$0xff]
        %v455 = vld [vmem:[#allocation8 + $0x68] sm:$0xff]
        %v456 = vld [vmem:[#allocation8 + $0x70] sm:$0xff]
        %v457 = vld [vmem:[#allocation8 + $0x78] sm:$0xff]
        %v458 = vld [vmem:[#allocation8 + $0x80] sm:$0xff]
        %v459 = vld [vmem:[#allocation8 + $0x88] sm:$0xff]
        %v460 = vld [vmem:[#allocation8 + $0x90] sm:$0xff]
        %v461 = vld [vmem:[#allocation8 + $0x98] sm:$0xff]
        %v462 = vld [vmem:[#allocation8 + $0xa0] sm:$0xff]
        %v463 = vld [vmem:[#allocation8 + $0xa8] sm:$0xff]
        %v464 = vld [vmem:[#allocation8 + $0xb0] sm:$0xff]
        %v465 = vld [vmem:[#allocation8 + $0xb8] sm:$0xff]
        %v466 = vld [vmem:[#allocation8 + $0xc0] sm:$0xff]
        %v467 = vld [vmem:[#allocation8 + $0xc8] sm:$0xff]
        %v468 = vld [vmem:[#allocation8 + $0xd0] sm:$0xff]
        %v469 = vld [vmem:[#allocation8 + $0xd8] sm:$0xff]
        %v470 = vld [vmem:[#allocation8 + $0xe0] sm:$0xff]
        %v471 = vld [vmem:[#allocation8 + $0xe8] sm:$0xff]
        %v472 = vld [vmem:[#allocation8 + $0xf0] sm:$0xff]
        %v473 = vld [vmem:[#allocation8 + $0xf8] sm:$0xff]
        %v474 = vld [vmem:[#allocation8 + $0x100] sm:$0xff]
        %v475 = vld [vmem:[#allocation8 + $0x108] sm:$0xff]
        %v476 = vld [vmem:[#allocation8 + $0x110] sm:$0xff]
        %v477 = vld [vmem:[#allocation8 + $0x118] sm:$0xff]
        %v478 = vld [vmem:[#allocation8 + $0x120] sm:$0xff]
        %v479 = vld [vmem:[#allocation8 + $0x128] sm:$0xff]
        %v480 = vld [vmem:[#allocation8 + $0x130] sm:$0xff]
        %v481 = vld [vmem:[#allocation8 + $0x138] sm:$0xff]
        %v482 = vld [vmem:[#allocation8 + $0x140] sm:$0xff]
        %v483 = vld [vmem:[#allocation8 + $0x148] sm:$0xff]
        %v484 = vld [vmem:[#allocation8 + $0x150] sm:$0xff]
        %v485 = vld [vmem:[#allocation8 + $0x158] sm:$0xff]
        %v486 = vld [vmem:[#allocation8 + $0x160] sm:$0xff]
        %v487 = vld [vmem:[#allocation8 + $0x168] sm:$0xff]
        %v488 = vld [vmem:[#allocation8 + $0x170] sm:$0xff]
        %v489 = vld [vmem:[#allocation8 + $0x178] sm:$0xff]
        %v490 = vld [vmem:[#allocation8 + $0x180] sm:$0xff]
        %v491 = vld [vmem:[#allocation8 + $0x188] sm:$0xff]
        %v492 = vld [vmem:[#allocation8 + $0x190] sm:$0xff]
        %v493 = vld [vmem:[#allocation8 + $0x198] sm:$0xff]
        %v494 = vld [vmem:[#allocation8 + $0x1a0] sm:$0xff]
        %v495 = vld [vmem:[#allocation8 + $0x1a8] sm:$0xff]
        %v496 = vld [vmem:[#allocation8 + $0x1b0] sm:$0xff]
        %v497 = vld [vmem:[#allocation8 + $0x1b8] sm:$0xff]
        %v498 = vld [vmem:[#allocation8 + $0x1c0] sm:$0xff]
        %v499 = vld [vmem:[#allocation8 + $0x1c8] sm:$0xff]
        %v500 = vld [vmem:[#allocation8 + $0x1d0] sm:$0xff]
        %v501 = vld [vmem:[#allocation8 + $0x1d8] sm:$0xff]
        %v502 = vld [vmem:[#allocation8 + $0x1e0] sm:$0xff]
        %v503 = vld [vmem:[#allocation8 + $0x1e8] sm:$0xff]
        %v504 = vld [vmem:[#allocation8 + $0x1f0] sm:$0xff]
        %v505 = vld [vmem:[#allocation8 + $0x1f8] sm:$0xff]
        %506 = vmatprep.subr.mxu0 0.0
        %507 = vmatpush1.xpose.msra.mxu0 %v378
        %508 = vmatprep.subr.mxu0 0.0
        %509 = vmatpush1.xpose.msra.mxu0 %v379
        %510 = vmatprep.subr.mxu0 0.0
        %511 = vmatpush1.xpose.msra.mxu0 %v380
        %512 = vmatprep.subr.mxu0 0.0
        %513 = vmatpush1.xpose.msra.mxu0 %v381
        %514 = vmatprep.subr.mxu0 0.0
        %515 = vmatpush1.xpose.msra.mxu0 %v382
        %516 = vmatprep.subr.mxu0 0.0
        %517 = vmatpush1.xpose.msra.mxu0 %v383
        %518 = vmatprep.subr.mxu0 0.0
        %519 = vmatpush1.xpose.msra.mxu0 %v384
        %520 = vmatprep.subr.mxu0 0.0
        %521 = vmatpush1.xpose.msra.mxu0 %v385
        %522 = vmatprep.subr.mxu0 0.0
        %523 = vmatpush1.xpose.msra.mxu0 %v386
        %524 = vmatprep.subr.mxu0 0.0
        %525 = vmatpush1.xpose.msra.mxu0 %v387
        %526 = vmatprep.subr.mxu0 0.0
        %527 = vmatpush1.xpose.msra.mxu0 %v388
        %528 = vmatprep.subr.mxu0 0.0
        %529 = vmatpush1.xpose.msra.mxu0 %v389
        %530 = vmatprep.subr.mxu0 0.0
        %531 = vmatpush1.xpose.msra.mxu0 %v390
        %532 = vmatprep.subr.mxu0 0.0
        %533 = vmatpush1.xpose.msra.mxu0 %v391
        %534 = vmatprep.subr.mxu0 0.0
        %535 = vmatpush1.xpose.msra.mxu0 %v392
        %536 = vmatprep.subr.mxu0 0.0
        %537 = vmatpush1.xpose.msra.mxu0 %v393
        %538 = vmatprep.subr.mxu0 0.0
        %539 = vmatpush1.xpose.msra.mxu0 %v394
        %540 = vmatprep.subr.mxu0 0.0
        %541 = vmatpush1.xpose.msra.mxu0 %v395
        %542 = vmatprep.subr.mxu0 0.0
        %543 = vmatpush1.xpose.msra.mxu0 %v396
        %544 = vmatprep.subr.mxu0 0.0
        %545 = vmatpush1.xpose.msra.mxu0 %v397
        %546 = vmatprep.subr.mxu0 0.0
        %547 = vmatpush1.xpose.msra.mxu0 %v398
        %548 = vmatprep.subr.mxu0 0.0
        %549 = vmatpush1.xpose.msra.mxu0 %v399
        %550 = vmatprep.subr.mxu0 0.0
        %551 = vmatpush1.xpose.msra.mxu0 %v400
        %552 = vmatprep.subr.mxu0 0.0
        %553 = vmatpush1.xpose.msra.mxu0 %v401
        %554 = vmatprep.subr.mxu0 0.0
        %555 = vmatpush1.xpose.msra.mxu0 %v402
        %556 = vmatprep.subr.mxu0 0.0
        %557 = vmatpush1.xpose.msra.mxu0 %v403
        %558 = vmatprep.subr.mxu0 0.0
        %559 = vmatpush1.xpose.msra.mxu0 %v404
        %560 = vmatprep.subr.mxu0 0.0
        %561 = vmatpush1.xpose.msra.mxu0 %v405
        %562 = vmatprep.subr.mxu0 0.0
        %563 = vmatpush1.xpose.msra.mxu0 %v406
        %564 = vmatprep.subr.mxu0 0.0
        %565 = vmatpush1.xpose.msra.mxu0 %v407
        %566 = vmatprep.subr.mxu0 0.0
        %567 = vmatpush1.xpose.msra.mxu0 %v408
        %568 = vmatprep.subr.mxu0 0.0
        %569 = vmatpush1.xpose.msra.mxu0 %v409
        %570 = vmatprep.mubr.f32.mxu0 0.0
        %571 = vmatmul.mubr.f32.gmra.mrb[0].mxu0 %v346
        %v572 = vpop.f32.mrb[0].mxu0
        %v573 = vadd.f32 0.0, %v572
        %v574 = vpop.f32.mrb[0].mxu0
        %v575 = vadd.f32 0.0, %v574
        %576 = vmatprep.mubr.f32.mxu0 0.0
        %577 = vmatmul.mubr.f32.gmra.mrb[0].mxu0 %v347
        %v578 = vpop.f32.mrb[0].mxu0
        %v579 = vadd.f32 0.0, %v578
        %v580 = vpop.f32.mrb[0].mxu0
        %v581 = vadd.f32 0.0, %v580
        %582 = vmatprep.mubr.f32.mxu0 0.0
        %583 = vmatmul.mubr.f32.gmra.mrb[0].mxu0 %v348
        %v584 = vpop.f32.mrb[0].mxu0
        %v585 = vadd.f32 0.0, %v584
        %v586 = vpop.f32.mrb[0].mxu0
        %v587 = vadd.f32 0.0, %v586
        %588 = vmatprep.mubr.f32.mxu0 0.0
        %589 = vmatmul.mubr.f32.gmra.mrb[0].mxu0 %v349
        %v590 = vpop.f32.mrb[0].mxu0
        %v591 = vadd.f32 0.0, %v590
        %v592 = vpop.f32.mrb[0].mxu0
        %v593 = vadd.f32 0.0, %v592
        %594 = vmatprep.mubr.f32.mxu0 0.0
        %595 = vmatmul.mubr.f32.gmra.mrb[0].mxu0 %v350
        %v596 = vpop.f32.mrb[0].mxu0
        %v597 = vadd.f32 0.0, %v596
        %v598 = vpop.f32.mrb[0].mxu0
        %v599 = vadd.f32 0.0, %v598
        %600 = vmatprep.mubr.f32.mxu0 0.0
        %601 = vmatmul.mubr.f32.gmra.mrb[0].mxu0 %v351
        %v602 = vpop.f32.mrb[0].mxu0
        %v603 = vadd.f32 0.0, %v602
        %v604 = vpop.f32.mrb[0].mxu0
        %v605 = vadd.f32 0.0, %v604
        %606 = vmatprep.mubr.f32.mxu0 0.0
        %607 = vmatmul.mubr.f32.gmra.mrb[0].mxu0 %v352
        %v608 = vpop.f32.mrb[0].mxu0
        %v609 = vadd.f32 0.0, %v608
        %v610 = vpop.f32.mrb[0].mxu0
        %v611 = vadd.f32 0.0, %v610
        %612 = vmatprep.mubr.f32.mxu0 0.0
        %613 = vmatmul.mubr.f32.gmra.mrb[0].mxu0 %v353
        %v614 = vpop.f32.mrb[0].mxu0
        %v615 = vadd.f32 0.0, %v614
        %v616 = vpop.f32.mrb[0].mxu0
        %v617 = vadd.f32 0.0, %v616
        %618 = vmatprep.mubr.f32.mxu0 0.0
        %619 = vmatmul.mubr.f32.gmra.mrb[0].mxu0 %v354
        %v620 = vpop.f32.mrb[0].mxu0
        %v621 = vadd.f32 0.0, %v620
        %v622 = vpop.f32.mrb[0].mxu0
        %v623 = vadd.f32 0.0, %v622
        %624 = vmatprep.mubr.f32.mxu0 0.0
        %625 = vmatmul.mubr.f32.gmra.mrb[0].mxu0 %v355
        %v626 = vpop.f32.mrb[0].mxu0
        %v627 = vadd.f32 0.0, %v626
        %v628 = vpop.f32.mrb[0].mxu0
        %v629 = vadd.f32 0.0, %v628
        %630 = vmatprep.mubr.f32.mxu0 0.0
        %631 = vmatmul.mubr.f32.gmra.mrb[0].mxu0 %v356
        %v632 = vpop.f32.mrb[0].mxu0
        %v633 = vadd.f32 0.0, %v632
        %v634 = vpop.f32.mrb[0].mxu0
        %v635 = vadd.f32 0.0, %v634
        %636 = vmatprep.mubr.f32.mxu0 0.0
        %637 = vmatmul.mubr.f32.gmra.mrb[0].mxu0 %v357
        %v638 = vpop.f32.mrb[0].mxu0
        %v639 = vadd.f32 0.0, %v638
        %v640 = vpop.f32.mrb[0].mxu0
        %v641 = vadd.f32 0.0, %v640
        %642 = vmatprep.mubr.f32.mxu0 0.0
        %643 = vmatmul.mubr.f32.gmra.mrb[0].mxu0 %v358
        %v644 = vpop.f32.mrb[0].mxu0
        %v645 = vadd.f32 0.0, %v644
        %v646 = vpop.f32.mrb[0].mxu0
        %v647 = vadd.f32 0.0, %v646
        %648 = vmatprep.mubr.f32.mxu0 0.0
        %649 = vmatmul.mubr.f32.gmra.mrb[0].mxu0 %v359
        %v650 = vpop.f32.mrb[0].mxu0
        %v651 = vadd.f32 0.0, %v650
        %v652 = vpop.f32.mrb[0].mxu0
        %v653 = vadd.f32 0.0, %v652
        %654 = vmatprep.mubr.f32.mxu0 0.0
        %655 = vmatmul.mubr.f32.gmra.mrb[0].mxu0 %v360
        %v656 = vpop.f32.mrb[0].mxu0
        %v657 = vadd.f32 0.0, %v656
        %v658 = vpop.f32.mrb[0].mxu0
        %v659 = vadd.f32 0.0, %v658
        %660 = vmatprep.mubr.f32.mxu0 0.0
        %661 = vmatmul.mubr.f32.gmra.mrb[0].mxu0 %v361
        %v662 = vpop.f32.mrb[0].mxu0
        %v663 = vadd.f32 0.0, %v662
        %v664 = vpop.f32.mrb[0].mxu0
        %v665 = vadd.f32 0.0, %v664
        %666 = vdwg.mxu0
        %667 = vmatprep.subr.mxu0 0.0
        %668 = vmatpush1.xpose.msra.mxu0 %v410
        %669 = vmatprep.subr.mxu0 0.0
        %670 = vmatpush1.xpose.msra.mxu0 %v411
        %671 = vmatprep.subr.mxu0 0.0
        %672 = vmatpush1.xpose.msra.mxu0 %v412
        %673 = vmatprep.subr.mxu0 0.0
        %674 = vmatpush1.xpose.msra.mxu0 %v413
        %675 = vmatprep.subr.mxu0 0.0
        %676 = vmatpush1.xpose.msra.mxu0 %v414
        %677 = vmatprep.subr.mxu0 0.0
        %678 = vmatpush1.xpose.msra.mxu0 %v415
        %679 = vmatprep.subr.mxu0 0.0
        %680 = vmatpush1.xpose.msra.mxu0 %v416
        %681 = vmatprep.subr.mxu0 0.0
        %682 = vmatpush1.xpose.msra.mxu0 %v417
        %683 = vmatprep.subr.mxu0 0.0
        %684 = vmatpush1.xpose.msra.mxu0 %v418
        %685 = vmatprep.subr.mxu0 0.0
        %686 = vmatpush1.xpose.msra.mxu0 %v419
        %687 = vmatprep.subr.mxu0 0.0
        %688 = vmatpush1.xpose.msra.mxu0 %v420
        %689 = vmatprep.subr.mxu0 0.0
        %690 = vmatpush1.xpose.msra.mxu0 %v421
        %691 = vmatprep.subr.mxu0 0.0
        %692 = vmatpush1.xpose.msra.mxu0 %v422
        %693 = vmatprep.subr.mxu0 0.0
        %694 = vmatpush1.xpose.msra.mxu0 %v423
        %695 = vmatprep.subr.mxu0 0.0
        %696 = vmatpush1.xpose.msra.mxu0 %v424
        %697 = vmatprep.subr.mxu0 0.0
        %698 = vmatpush1.xpose.msra.mxu0 %v425
        %699 = vmatprep.subr.mxu0 0.0
        %700 = vmatpush1.xpose.msra.mxu0 %v426
        %701 = vmatprep.subr.mxu0 0.0
        %702 = vmatpush1.xpose.msra.mxu0 %v427
        %703 = vmatprep.subr.mxu0 0.0
        %704 = vmatpush1.xpose.msra.mxu0 %v428
        %705 = vmatprep.subr.mxu0 0.0
        %706 = vmatpush1.xpose.msra.mxu0 %v429
        %707 = vmatprep.subr.mxu0 0.0
        %708 = vmatpush1.xpose.msra.mxu0 %v430
        %709 = vmatprep.subr.mxu0 0.0
        %710 = vmatpush1.xpose.msra.mxu0 %v431
        %711 = vmatprep.subr.mxu0 0.0
        %712 = vmatpush1.xpose.msra.mxu0 %v432
        %713 = vmatprep.subr.mxu0 0.0
        %714 = vmatpush1.xpose.msra.mxu0 %v433
        %715 = vmatprep.subr.mxu0 0.0
        %716 = vmatpush1.xpose.msra.mxu0 %v434
        %717 = vmatprep.subr.mxu0 0.0
        %718 = vmatpush1.xpose.msra.mxu0 %v435
        %719 = vmatprep.subr.mxu0 0.0
        %720 = vmatpush1.xpose.msra.mxu0 %v436
        %721 = vmatprep.subr.mxu0 0.0
        %722 = vmatpush1.xpose.msra.mxu0 %v437
        %723 = vmatprep.subr.mxu0 0.0
        %724 = vmatpush1.xpose.msra.mxu0 %v438
        %725 = vmatprep.subr.mxu0 0.0
        %726 = vmatpush1.xpose.msra.mxu0 %v439
        %727 = vmatprep.subr.mxu0 0.0
        %728 = vmatpush1.xpose.msra.mxu0 %v440
        %729 = vmatprep.subr.mxu0 0.0
        %730 = vmatpush1.xpose.msra.mxu0 %v441
        %731 = vmatprep.mubr.f32.mxu0 0.0
        %732 = vmatmul.mubr.f32.gmra.mrb[0].mxu0 %v362
        %v733 = vpop.f32.mrb[0].mxu0
        %v734 = vadd.f32 0.0, %v733
        %v735 = vpop.f32.mrb[0].mxu0
        %v736 = vadd.f32 0.0, %v735
        %737 = vmatprep.mubr.f32.mxu0 0.0
        %738 = vmatmul.mubr.f32.gmra.mrb[0].mxu0 %v363
        %v739 = vpop.f32.mrb[0].mxu0
        %v740 = vadd.f32 0.0, %v739
        %v741 = vpop.f32.mrb[0].mxu0
        %v742 = vadd.f32 0.0, %v741
        %743 = vmatprep.mubr.f32.mxu0 0.0
        %744 = vmatmul.mubr.f32.gmra.mrb[0].mxu0 %v364
        %v745 = vpop.f32.mrb[0].mxu0
        %v746 = vadd.f32 0.0, %v745
        %v747 = vpop.f32.mrb[0].mxu0
        %v748 = vadd.f32 0.0, %v747
        %749 = vmatprep.mubr.f32.mxu0 0.0
        %750 = vmatmul.mubr.f32.gmra.mrb[0].mxu0 %v365
        %v751 = vpop.f32.mrb[0].mxu0
        %v752 = vadd.f32 0.0, %v751
        %v753 = vpop.f32.mrb[0].mxu0
        %v754 = vadd.f32 0.0, %v753
        %755 = vmatprep.mubr.f32.mxu0 0.0
        %756 = vmatmul.mubr.f32.gmra.mrb[0].mxu0 %v366
        %v757 = vpop.f32.mrb[0].mxu0
        %v758 = vadd.f32 0.0, %v757
        %v759 = vpop.f32.mrb[0].mxu0
        %v760 = vadd.f32 0.0, %v759
        %761 = vmatprep.mubr.f32.mxu0 0.0
        %762 = vmatmul.mubr.f32.gmra.mrb[0].mxu0 %v367
        %v763 = vpop.f32.mrb[0].mxu0
        %v764 = vadd.f32 0.0, %v763
        %v765 = vpop.f32.mrb[0].mxu0
        %v766 = vadd.f32 0.0, %v765
        %767 = vmatprep.mubr.f32.mxu0 0.0
        %768 = vmatmul.mubr.f32.gmra.mrb[0].mxu0 %v368
        %v769 = vpop.f32.mrb[0].mxu0
        %v770 = vadd.f32 0.0, %v769
        %v771 = vpop.f32.mrb[0].mxu0
        %v772 = vadd.f32 0.0, %v771
        %773 = vmatprep.mubr.f32.mxu0 0.0
        %774 = vmatmul.mubr.f32.gmra.mrb[0].mxu0 %v369
        %v775 = vpop.f32.mrb[0].mxu0
        %v776 = vadd.f32 0.0, %v775
        %v777 = vpop.f32.mrb[0].mxu0
        %v778 = vadd.f32 0.0, %v777
        %779 = vmatprep.mubr.f32.mxu0 0.0
        %780 = vmatmul.mubr.f32.gmra.mrb[0].mxu0 %v370
        %v781 = vpop.f32.mrb[0].mxu0
        %v782 = vadd.f32 0.0, %v781
        %v783 = vpop.f32.mrb[0].mxu0
        %v784 = vadd.f32 0.0, %v783
        %785 = vmatprep.mubr.f32.mxu0 0.0
        %786 = vmatmul.mubr.f32.gmra.mrb[0].mxu0 %v371
        %v787 = vpop.f32.mrb[0].mxu0
        %v788 = vadd.f32 0.0, %v787
        %v789 = vpop.f32.mrb[0].mxu0
        %v790 = vadd.f32 0.0, %v789
        %791 = vmatprep.mubr.f32.mxu0 0.0
        %792 = vmatmul.mubr.f32.gmra.mrb[0].mxu0 %v372
        %v793 = vpop.f32.mrb[0].mxu0
        %v794 = vadd.f32 0.0, %v793
        %v795 = vpop.f32.mrb[0].mxu0
        %v796 = vadd.f32 0.0, %v795
        %797 = vmatprep.mubr.f32.mxu0 0.0
        %798 = vmatmul.mubr.f32.gmra.mrb[0].mxu0 %v373
        %v799 = vpop.f32.mrb[0].mxu0
        %v800 = vadd.f32 0.0, %v799
        %v801 = vpop.f32.mrb[0].mxu0
        %v802 = vadd.f32 0.0, %v801
        %803 = vmatprep.mubr.f32.mxu0 0.0
        %804 = vmatmul.mubr.f32.gmra.mrb[0].mxu0 %v374
        %v805 = vpop.f32.mrb[0].mxu0
        %v806 = vadd.f32 0.0, %v805
        %v807 = vpop.f32.mrb[0].mxu0
        %v808 = vadd.f32 0.0, %v807
        %809 = vmatprep.mubr.f32.mxu0 0.0
        %810 = vmatmul.mubr.f32.gmra.mrb[0].mxu0 %v375
        %v811 = vpop.f32.mrb[0].mxu0
        %v812 = vadd.f32 0.0, %v811
        %v813 = vpop.f32.mrb[0].mxu0
        %v814 = vadd.f32 0.0, %v813
        %815 = vmatprep.mubr.f32.mxu0 0.0
        %816 = vmatmul.mubr.f32.gmra.mrb[0].mxu0 %v376
        %v817 = vpop.f32.mrb[0].mxu0
        %v818 = vadd.f32 0.0, %v817
        %v819 = vpop.f32.mrb[0].mxu0
        %v820 = vadd.f32 0.0, %v819
        %821 = vmatprep.mubr.f32.mxu0 0.0
        %822 = vmatmul.mubr.f32.gmra.mrb[0].mxu0 %v377
        %v823 = vpop.f32.mrb[0].mxu0
        %v824 = vadd.f32 0.0, %v823
        %v825 = vpop.f32.mrb[0].mxu0
        %v826 = vadd.f32 0.0, %v825
        %827 = vdwg.mxu0
        %v828 = vmax.f32 %v573, %v575
        %829 = vmax.xlane.f32.xlu0 %v828
        %v830 = vpop.xlane.xlu0 %829
        %v831 = vmax.f32 %v579, %v581
        %832 = vmax.xlane.f32.xlu0 %v831
        %v833 = vpop.xlane.xlu0 %832
        %v834 = vmax.f32 %v585, %v587
        %835 = vmax.xlane.f32.xlu0 %v834
        %v836 = vpop.xlane.xlu0 %835
        %v837 = vmax.f32 %v591, %v593
        %838 = vmax.xlane.f32.xlu0 %v837
        %v839 = vpop.xlane.xlu0 %838
        %v840 = vmax.f32 %v597, %v599
        %841 = vmax.xlane.f32.xlu0 %v840
        %v842 = vpop.xlane.xlu0 %841
        %v843 = vmax.f32 %v603, %v605
        %844 = vmax.xlane.f32.xlu0 %v843
        %v845 = vpop.xlane.xlu0 %844
        %v846 = vmax.f32 %v609, %v611
        %847 = vmax.xlane.f32.xlu0 %v846
        %v848 = vpop.xlane.xlu0 %847
        %v849 = vmax.f32 %v615, %v617
        %850 = vmax.xlane.f32.xlu0 %v849
        %v851 = vpop.xlane.xlu0 %850
        %v852 = vmax.f32 %v621, %v623
        %853 = vmax.xlane.f32.xlu0 %v852
        %v854 = vpop.xlane.xlu0 %853
        %v855 = vmax.f32 %v627, %v629
        %856 = vmax.xlane.f32.xlu0 %v855
        %v857 = vpop.xlane.xlu0 %856
        %v858 = vmax.f32 %v633, %v635
        %859 = vmax.xlane.f32.xlu0 %v858
        %v860 = vpop.xlane.xlu0 %859
        %v861 = vmax.f32 %v639, %v641
        %862 = vmax.xlane.f32.xlu0 %v861
        %v863 = vpop.xlane.xlu0 %862
        %v864 = vmax.f32 %v645, %v647
        %865 = vmax.xlane.f32.xlu0 %v864
        %v866 = vpop.xlane.xlu0 %865
        %v867 = vmax.f32 %v651, %v653
        %868 = vmax.xlane.f32.xlu0 %v867
        %v869 = vpop.xlane.xlu0 %868
        %v870 = vmax.f32 %v657, %v659
        %871 = vmax.xlane.f32.xlu0 %v870
        %v872 = vpop.xlane.xlu0 %871
        %v873 = vmax.f32 %v663, %v665
        %874 = vmax.xlane.f32.xlu0 %v873
        %v875 = vpop.xlane.xlu0 %874
        %v876 = vmax.f32 %v734, %v736
        %877 = vmax.xlane.f32.xlu0 %v876
        %v878 = vpop.xlane.xlu0 %877
        %v879 = vmax.f32 %v740, %v742
        %880 = vmax.xlane.f32.xlu0 %v879
        %v881 = vpop.xlane.xlu0 %880
        %v882 = vmax.f32 %v746, %v748
        %883 = vmax.xlane.f32.xlu0 %v882
        %v884 = vpop.xlane.xlu0 %883
        %v885 = vmax.f32 %v752, %v754
        %886 = vmax.xlane.f32.xlu0 %v885
        %v887 = vpop.xlane.xlu0 %886
        %v888 = vmax.f32 %v758, %v760
        %889 = vmax.xlane.f32.xlu0 %v888
        %v890 = vpop.xlane.xlu0 %889
        %v891 = vmax.f32 %v764, %v766
        %892 = vmax.xlane.f32.xlu0 %v891
        %v893 = vpop.xlane.xlu0 %892
        %v894 = vmax.f32 %v770, %v772
        %895 = vmax.xlane.f32.xlu0 %v894
        %v896 = vpop.xlane.xlu0 %895
        %v897 = vmax.f32 %v776, %v778
        %898 = vmax.xlane.f32.xlu0 %v897
        %v899 = vpop.xlane.xlu0 %898
        %v900 = vmax.f32 %v782, %v784
        %901 = vmax.xlane.f32.xlu0 %v900
        %v902 = vpop.xlane.xlu0 %901
        %v903 = vmax.f32 %v788, %v790
        %904 = vmax.xlane.f32.xlu0 %v903
        %v905 = vpop.xlane.xlu0 %904
        %v906 = vmax.f32 %v794, %v796
        %907 = vmax.xlane.f32.xlu0 %v906
        %v908 = vpop.xlane.xlu0 %907
        %v909 = vmax.f32 %v800, %v802
        %910 = vmax.xlane.f32.xlu0 %v909
        %v911 = vpop.xlane.xlu0 %910
        %v912 = vmax.f32 %v806, %v808
        %913 = vmax.xlane.f32.xlu0 %v912
        %v914 = vpop.xlane.xlu0 %913
        %v915 = vmax.f32 %v812, %v814
        %916 = vmax.xlane.f32.xlu0 %v915
        %v917 = vpop.xlane.xlu0 %916
        %v918 = vmax.f32 %v818, %v820
        %919 = vmax.xlane.f32.xlu0 %v918
        %v920 = vpop.xlane.xlu0 %919
        %v921 = vmax.f32 %v824, %v826
        %922 = vmax.xlane.f32.xlu0 %v921
        %v923 = vpop.xlane.xlu0 %922
        %v924 = vsub.f32 %v573, %v830
        %v925 = vsub.f32 %v575, %v830
        %v926 = vsub.f32 %v579, %v833
        %v927 = vsub.f32 %v581, %v833
        %v928 = vsub.f32 %v585, %v836
        %v929 = vsub.f32 %v587, %v836
        %v930 = vsub.f32 %v591, %v839
        %v931 = vsub.f32 %v593, %v839
        %v932 = vsub.f32 %v597, %v842
        %v933 = vsub.f32 %v599, %v842
        %v934 = vsub.f32 %v603, %v845
        %v935 = vsub.f32 %v605, %v845
        %v936 = vsub.f32 %v609, %v848
        %v937 = vsub.f32 %v611, %v848
        %v938 = vsub.f32 %v615, %v851
        %v939 = vsub.f32 %v617, %v851
        %v940 = vsub.f32 %v621, %v854
        %v941 = vsub.f32 %v623, %v854
        %v942 = vsub.f32 %v627, %v857
        %v943 = vsub.f32 %v629, %v857
        %v944 = vsub.f32 %v633, %v860
        %v945 = vsub.f32 %v635, %v860
        %v946 = vsub.f32 %v639, %v863
        %v947 = vsub.f32 %v641, %v863
        %v948 = vsub.f32 %v645, %v866
        %v949 = vsub.f32 %v647, %v866
        %v950 = vsub.f32 %v651, %v869
        %v951 = vsub.f32 %v653, %v869
        %v952 = vsub.f32 %v657, %v872
        %v953 = vsub.f32 %v659, %v872
        %v954 = vsub.f32 %v663, %v875
        %v955 = vsub.f32 %v665, %v875
        %v956 = vsub.f32 %v734, %v878
        %v957 = vsub.f32 %v736, %v878
        %v958 = vsub.f32 %v740, %v881
        %v959 = vsub.f32 %v742, %v881
        %v960 = vsub.f32 %v746, %v884
        %v961 = vsub.f32 %v748, %v884
        %v962 = vsub.f32 %v752, %v887
        %v963 = vsub.f32 %v754, %v887
        %v964 = vsub.f32 %v758, %v890
        %v965 = vsub.f32 %v760, %v890
        %v966 = vsub.f32 %v764, %v893
        %v967 = vsub.f32 %v766, %v893
        %v968 = vsub.f32 %v770, %v896
        %v969 = vsub.f32 %v772, %v896
        %v970 = vsub.f32 %v776, %v899
        %v971 = vsub.f32 %v778, %v899
        %v972 = vsub.f32 %v782, %v902
        %v973 = vsub.f32 %v784, %v902
        %v974 = vsub.f32 %v788, %v905
        %v975 = vsub.f32 %v790, %v905
        %v976 = vsub.f32 %v794, %v908
        %v977 = vsub.f32 %v796, %v908
        %v978 = vsub.f32 %v800, %v911
        %v979 = vsub.f32 %v802, %v911
        %v980 = vsub.f32 %v806, %v914
        %v981 = vsub.f32 %v808, %v914
        %v982 = vsub.f32 %v812, %v917
        %v983 = vsub.f32 %v814, %v917
        %v984 = vsub.f32 %v818, %v920
        %v985 = vsub.f32 %v820, %v920
        %v986 = vsub.f32 %v824, %v923
        %v987 = vsub.f32 %v826, %v923
        %v988 = vmul.f32 %v924, 1.442695
        %v989 = vpow.pop %v988
        %v990 = vmul.f32 %v925, 1.442695
        %v991 = vpow.pop %v990
        %v992 = vmul.f32 %v926, 1.442695
        %v993 = vpow.pop %v992
        %v994 = vmul.f32 %v927, 1.442695
        %v995 = vpow.pop %v994
        %v996 = vmul.f32 %v928, 1.442695
        %v997 = vpow.pop %v996
        %v998 = vmul.f32 %v929, 1.442695
        %v999 = vpow.pop %v998
        %v1000 = vmul.f32 %v930, 1.442695
        %v1001 = vpow.pop %v1000
        %v1002 = vmul.f32 %v931, 1.442695
        %v1003 = vpow.pop %v1002
        %v1004 = vmul.f32 %v932, 1.442695
        %v1005 = vpow.pop %v1004
        %v1006 = vmul.f32 %v933, 1.442695
        %v1007 = vpow.pop %v1006
        %v1008 = vmul.f32 %v934, 1.442695
        %v1009 = vpow.pop %v1008
        %v1010 = vmul.f32 %v935, 1.442695
        %v1011 = vpow.pop %v1010
        %v1012 = vmul.f32 %v936, 1.442695
        %v1013 = vpow.pop %v1012
        %v1014 = vmul.f32 %v937, 1.442695
        %v1015 = vpow.pop %v1014
        %v1016 = vmul.f32 %v938, 1.442695
        %v1017 = vpow.pop %v1016
        %v1018 = vmul.f32 %v939, 1.442695
        %v1019 = vpow.pop %v1018
        %v1020 = vmul.f32 %v940, 1.442695
        %v1021 = vpow.pop %v1020
        %v1022 = vmul.f32 %v941, 1.442695
        %v1023 = vpow.pop %v1022
        %v1024 = vmul.f32 %v942, 1.442695
        %v1025 = vpow.pop %v1024
        %v1026 = vmul.f32 %v943, 1.442695
        %v1027 = vpow.pop %v1026
        %v1028 = vmul.f32 %v944, 1.442695
        %v1029 = vpow.pop %v1028
        %v1030 = vmul.f32 %v945, 1.442695
        %v1031 = vpow.pop %v1030
        %v1032 = vmul.f32 %v946, 1.442695
        %v1033 = vpow.pop %v1032
        %v1034 = vmul.f32 %v947, 1.442695
        %v1035 = vpow.pop %v1034
        %v1036 = vmul.f32 %v948, 1.442695
        %v1037 = vpow.pop %v1036
        %v1038 = vmul.f32 %v949, 1.442695
        %v1039 = vpow.pop %v1038
        %v1040 = vmul.f32 %v950, 1.442695
        %v1041 = vpow.pop %v1040
        %v1042 = vmul.f32 %v951, 1.442695
        %v1043 = vpow.pop %v1042
        %v1044 = vmul.f32 %v952, 1.442695
        %v1045 = vpow.pop %v1044
        %v1046 = vmul.f32 %v953, 1.442695
        %v1047 = vpow.pop %v1046
        %v1048 = vmul.f32 %v954, 1.442695
        %v1049 = vpow.pop %v1048
        %v1050 = vmul.f32 %v955, 1.442695
        %v1051 = vpow.pop %v1050
        %v1052 = vmul.f32 %v956, 1.442695
        %v1053 = vpow.pop %v1052
        %v1054 = vmul.f32 %v957, 1.442695
        %v1055 = vpow.pop %v1054
        %v1056 = vmul.f32 %v958, 1.442695
        %v1057 = vpow.pop %v1056
        %v1058 = vmul.f32 %v959, 1.442695
        %v1059 = vpow.pop %v1058
        %v1060 = vmul.f32 %v960, 1.442695
        %v1061 = vpow.pop %v1060
        %v1062 = vmul.f32 %v961, 1.442695
        %v1063 = vpow.pop %v1062
        %v1064 = vmul.f32 %v962, 1.442695
        %v1065 = vpow.pop %v1064
        %v1066 = vmul.f32 %v963, 1.442695
        %v1067 = vpow.pop %v1066
        %v1068 = vmul.f32 %v964, 1.442695
        %v1069 = vpow.pop %v1068
        %v1070 = vmul.f32 %v965, 1.442695
        %v1071 = vpow.pop %v1070
        %v1072 = vmul.f32 %v966, 1.442695
        %v1073 = vpow.pop %v1072
        %v1074 = vmul.f32 %v967, 1.442695
        %v1075 = vpow.pop %v1074
        %v1076 = vmul.f32 %v968, 1.442695
        %v1077 = vpow.pop %v1076
        %v1078 = vmul.f32 %v969, 1.442695
        %v1079 = vpow.pop %v1078
        %v1080 = vmul.f32 %v970, 1.442695
        %v1081 = vpow.pop %v1080
        %v1082 = vmul.f32 %v971, 1.442695
        %v1083 = vpow.pop %v1082
        %v1084 = vmul.f32 %v972, 1.442695
        %v1085 = vpow.pop %v1084
        %v1086 = vmul.f32 %v973, 1.442695
        %v1087 = vpow.pop %v1086
        %v1088 = vmul.f32 %v974, 1.442695
        %v1089 = vpow.pop %v1088
        %v1090 = vmul.f32 %v975, 1.442695
        %v1091 = vpow.pop %v1090
        %v1092 = vmul.f32 %v976, 1.442695
        %v1093 = vpow.pop %v1092
        %v1094 = vmul.f32 %v977, 1.442695
        %v1095 = vpow.pop %v1094
        %v1096 = vmul.f32 %v978, 1.442695
        %v1097 = vpow.pop %v1096
        %v1098 = vmul.f32 %v979, 1.442695
        %v1099 = vpow.pop %v1098
        %v1100 = vmul.f32 %v980, 1.442695
        %v1101 = vpow.pop %v1100
        %v1102 = vmul.f32 %v981, 1.442695
        %v1103 = vpow.pop %v1102
        %v1104 = vmul.f32 %v982, 1.442695
        %v1105 = vpow.pop %v1104
        %v1106 = vmul.f32 %v983, 1.442695
        %v1107 = vpow.pop %v1106
        %v1108 = vmul.f32 %v984, 1.442695
        %v1109 = vpow.pop %v1108
        %v1110 = vmul.f32 %v985, 1.442695
        %v1111 = vpow.pop %v1110
        %v1112 = vmul.f32 %v986, 1.442695
        %v1113 = vpow.pop %v1112
        %v1114 = vmul.f32 %v987, 1.442695
        %v1115 = vpow.pop %v1114
        %v1116 = vadd.f32 %v989, %v991
        %1117 = vadd.xlane.f32.xlu0 %v1116
        %v1118 = vpop.xlane.xlu0 %1117
        %v1119 = vadd.f32 %v993, %v995
        %1120 = vadd.xlane.f32.xlu0 %v1119
        %v1121 = vpop.xlane.xlu0 %1120
        %v1122 = vadd.f32 %v997, %v999
        %1123 = vadd.xlane.f32.xlu0 %v1122
        %v1124 = vpop.xlane.xlu0 %1123
        %v1125 = vadd.f32 %v1001, %v1003
        %1126 = vadd.xlane.f32.xlu0 %v1125
        %v1127 = vpop.xlane.xlu0 %1126
        %v1128 = vadd.f32 %v1005, %v1007
        %1129 = vadd.xlane.f32.xlu0 %v1128
        %v1130 = vpop.xlane.xlu0 %1129
        %v1131 = vadd.f32 %v1009, %v1011
        %1132 = vadd.xlane.f32.xlu0 %v1131
        %v1133 = vpop.xlane.xlu0 %1132
        %v1134 = vadd.f32 %v1013, %v1015
        %1135 = vadd.xlane.f32.xlu0 %v1134
        %v1136 = vpop.xlane.xlu0 %1135
        %v1137 = vadd.f32 %v1017, %v1019
        %1138 = vadd.xlane.f32.xlu0 %v1137
        %v1139 = vpop.xlane.xlu0 %1138
        %v1140 = vadd.f32 %v1021, %v1023
        %1141 = vadd.xlane.f32.xlu0 %v1140
        %v1142 = vpop.xlane.xlu0 %1141
        %v1143 = vadd.f32 %v1025, %v1027
        %1144 = vadd.xlane.f32.xlu0 %v1143
        %v1145 = vpop.xlane.xlu0 %1144
        %v1146 = vadd.f32 %v1029, %v1031
        %1147 = vadd.xlane.f32.xlu0 %v1146
        %v1148 = vpop.xlane.xlu0 %1147
        %v1149 = vadd.f32 %v1033, %v1035
        %1150 = vadd.xlane.f32.xlu0 %v1149
        %v1151 = vpop.xlane.xlu0 %1150
        %v1152 = vadd.f32 %v1037, %v1039
        %1153 = vadd.xlane.f32.xlu0 %v1152
        %v1154 = vpop.xlane.xlu0 %1153
        %v1155 = vadd.f32 %v1041, %v1043
        %1156 = vadd.xlane.f32.xlu0 %v1155
        %v1157 = vpop.xlane.xlu0 %1156
        %v1158 = vadd.f32 %v1045, %v1047
        %1159 = vadd.xlane.f32.xlu0 %v1158
        %v1160 = vpop.xlane.xlu0 %1159
        %v1161 = vadd.f32 %v1049, %v1051
        %1162 = vadd.xlane.f32.xlu0 %v1161
        %v1163 = vpop.xlane.xlu0 %1162
        %v1164 = vadd.f32 %v1053, %v1055
        %1165 = vadd.xlane.f32.xlu0 %v1164
        %v1166 = vpop.xlane.xlu0 %1165
        %v1167 = vadd.f32 %v1057, %v1059
        %1168 = vadd.xlane.f32.xlu0 %v1167
        %v1169 = vpop.xlane.xlu0 %1168
        %v1170 = vadd.f32 %v1061, %v1063
        %1171 = vadd.xlane.f32.xlu0 %v1170
        %v1172 = vpop.xlane.xlu0 %1171
        %v1173 = vadd.f32 %v1065, %v1067
        %1174 = vadd.xlane.f32.xlu0 %v1173
        %v1175 = vpop.xlane.xlu0 %1174
        %v1176 = vadd.f32 %v1069, %v1071
        %1177 = vadd.xlane.f32.xlu0 %v1176
        %v1178 = vpop.xlane.xlu0 %1177
        %v1179 = vadd.f32 %v1073, %v1075
        %1180 = vadd.xlane.f32.xlu0 %v1179
        %v1181 = vpop.xlane.xlu0 %1180
        %v1182 = vadd.f32 %v1077, %v1079
        %1183 = vadd.xlane.f32.xlu0 %v1182
        %v1184 = vpop.xlane.xlu0 %1183
        %v1185 = vadd.f32 %v1081, %v1083
        %1186 = vadd.xlane.f32.xlu0 %v1185
        %v1187 = vpop.xlane.xlu0 %1186
        %v1188 = vadd.f32 %v1085, %v1087
        %1189 = vadd.xlane.f32.xlu0 %v1188
        %v1190 = vpop.xlane.xlu0 %1189
        %v1191 = vadd.f32 %v1089, %v1091
        %1192 = vadd.xlane.f32.xlu0 %v1191
        %v1193 = vpop.xlane.xlu0 %1192
        %v1194 = vadd.f32 %v1093, %v1095
        %1195 = vadd.xlane.f32.xlu0 %v1194
        %v1196 = vpop.xlane.xlu0 %1195
        %v1197 = vadd.f32 %v1097, %v1099
        %1198 = vadd.xlane.f32.xlu0 %v1197
        %v1199 = vpop.xlane.xlu0 %1198
        %v1200 = vadd.f32 %v1101, %v1103
        %1201 = vadd.xlane.f32.xlu0 %v1200
        %v1202 = vpop.xlane.xlu0 %1201
        %v1203 = vadd.f32 %v1105, %v1107
        %1204 = vadd.xlane.f32.xlu0 %v1203
        %v1205 = vpop.xlane.xlu0 %1204
        %v1206 = vadd.f32 %v1109, %v1111
        %1207 = vadd.xlane.f32.xlu0 %v1206
        %v1208 = vpop.xlane.xlu0 %1207
        %v1209 = vadd.f32 %v1113, %v1115
        %1210 = vadd.xlane.f32.xlu0 %v1209
        %v1211 = vpop.xlane.xlu0 %1210
        %v1212 = vrcp.pop %v1118
        %v1213 = vmul.f32 1.0, %v1212
        %v1214 = vrcp.pop %v1121
        %v1215 = vmul.f32 1.0, %v1214
        %v1216 = vrcp.pop %v1124
        %v1217 = vmul.f32 1.0, %v1216
        %v1218 = vrcp.pop %v1127
        %v1219 = vmul.f32 1.0, %v1218
        %v1220 = vrcp.pop %v1130
        %v1221 = vmul.f32 1.0, %v1220
        %v1222 = vrcp.pop %v1133
        %v1223 = vmul.f32 1.0, %v1222
        %v1224 = vrcp.pop %v1136
        %v1225 = vmul.f32 1.0, %v1224
        %v1226 = vrcp.pop %v1139
        %v1227 = vmul.f32 1.0, %v1226
        %v1228 = vrcp.pop %v1142
        %v1229 = vmul.f32 1.0, %v1228
        %v1230 = vrcp.pop %v1145
        %v1231 = vmul.f32 1.0, %v1230
        %v1232 = vrcp.pop %v1148
        %v1233 = vmul.f32 1.0, %v1232
        %v1234 = vrcp.pop %v1151
        %v1235 = vmul.f32 1.0, %v1234
        %v1236 = vrcp.pop %v1154
        %v1237 = vmul.f32 1.0, %v1236
        %v1238 = vrcp.pop %v1157
        %v1239 = vmul.f32 1.0, %v1238
        %v1240 = vrcp.pop %v1160
        %v1241 = vmul.f32 1.0, %v1240
        %v1242 = vrcp.pop %v1163
        %v1243 = vmul.f32 1.0, %v1242
        %v1244 = vrcp.pop %v1166
        %v1245 = vmul.f32 1.0, %v1244
        %v1246 = vrcp.pop %v1169
        %v1247 = vmul.f32 1.0, %v1246
        %v1248 = vrcp.pop %v1172
        %v1249 = vmul.f32 1.0, %v1248
        %v1250 = vrcp.pop %v1175
        %v1251 = vmul.f32 1.0, %v1250
        %v1252 = vrcp.pop %v1178
        %v1253 = vmul.f32 1.0, %v1252
        %v1254 = vrcp.pop %v1181
        %v1255 = vmul.f32 1.0, %v1254
        %v1256 = vrcp.pop %v1184
        %v1257 = vmul.f32 1.0, %v1256
        %v1258 = vrcp.pop %v1187
        %v1259 = vmul.f32 1.0, %v1258
        %v1260 = vrcp.pop %v1190
        %v1261 = vmul.f32 1.0, %v1260
        %v1262 = vrcp.pop %v1193
        %v1263 = vmul.f32 1.0, %v1262
        %v1264 = vrcp.pop %v1196
        %v1265 = vmul.f32 1.0, %v1264
        %v1266 = vrcp.pop %v1199
        %v1267 = vmul.f32 1.0, %v1266
        %v1268 = vrcp.pop %v1202
        %v1269 = vmul.f32 1.0, %v1268
        %v1270 = vrcp.pop %v1205
        %v1271 = vmul.f32 1.0, %v1270
        %v1272 = vrcp.pop %v1208
        %v1273 = vmul.f32 1.0, %v1272
        %v1274 = vrcp.pop %v1211
        %v1275 = vmul.f32 1.0, %v1274
        %v1276 = vmul.f32 %v989, %v1213
        %v1277 = vmul.f32 %v991, %v1213
        %v1278 = vmul.f32 %v993, %v1215
        %v1279 = vmul.f32 %v995, %v1215
        %v1280 = vmul.f32 %v997, %v1217
        %v1281 = vmul.f32 %v999, %v1217
        %v1282 = vmul.f32 %v1001, %v1219
        %v1283 = vmul.f32 %v1003, %v1219
        %v1284 = vmul.f32 %v1005, %v1221
        %v1285 = vmul.f32 %v1007, %v1221
        %v1286 = vmul.f32 %v1009, %v1223
        %v1287 = vmul.f32 %v1011, %v1223
        %v1288 = vmul.f32 %v1013, %v1225
        %v1289 = vmul.f32 %v1015, %v1225
        %v1290 = vmul.f32 %v1017, %v1227
        %v1291 = vmul.f32 %v1019, %v1227
        %v1292 = vmul.f32 %v1021, %v1229
        %v1293 = vmul.f32 %v1023, %v1229
        %v1294 = vmul.f32 %v1025, %v1231
        %v1295 = vmul.f32 %v1027, %v1231
        %v1296 = vmul.f32 %v1029, %v1233
        %v1297 = vmul.f32 %v1031, %v1233
        %v1298 = vmul.f32 %v1033, %v1235
        %v1299 = vmul.f32 %v1035, %v1235
        %v1300 = vmul.f32 %v1037, %v1237
        %v1301 = vmul.f32 %v1039, %v1237
        %v1302 = vmul.f32 %v1041, %v1239
        %v1303 = vmul.f32 %v1043, %v1239
        %v1304 = vmul.f32 %v1045, %v1241
        %v1305 = vmul.f32 %v1047, %v1241
        %v1306 = vmul.f32 %v1049, %v1243
        %v1307 = vmul.f32 %v1051, %v1243
        %v1308 = vmul.f32 %v1053, %v1245
        %v1309 = vmul.f32 %v1055, %v1245
        %v1310 = vmul.f32 %v1057, %v1247
        %v1311 = vmul.f32 %v1059, %v1247
        %v1312 = vmul.f32 %v1061, %v1249
        %v1313 = vmul.f32 %v1063, %v1249
        %v1314 = vmul.f32 %v1065, %v1251
        %v1315 = vmul.f32 %v1067, %v1251
        %v1316 = vmul.f32 %v1069, %v1253
        %v1317 = vmul.f32 %v1071, %v1253
        %v1318 = vmul.f32 %v1073, %v1255
        %v1319 = vmul.f32 %v1075, %v1255
        %v1320 = vmul.f32 %v1077, %v1257
        %v1321 = vmul.f32 %v1079, %v1257
        %v1322 = vmul.f32 %v1081, %v1259
        %v1323 = vmul.f32 %v1083, %v1259
        %v1324 = vmul.f32 %v1085, %v1261
        %v1325 = vmul.f32 %v1087, %v1261
        %v1326 = vmul.f32 %v1089, %v1263
        %v1327 = vmul.f32 %v1091, %v1263
        %v1328 = vmul.f32 %v1093, %v1265
        %v1329 = vmul.f32 %v1095, %v1265
        %v1330 = vmul.f32 %v1097, %v1267
        %v1331 = vmul.f32 %v1099, %v1267
        %v1332 = vmul.f32 %v1101, %v1269
        %v1333 = vmul.f32 %v1103, %v1269
        %v1334 = vmul.f32 %v1105, %v1271
        %v1335 = vmul.f32 %v1107, %v1271
        %v1336 = vmul.f32 %v1109, %v1273
        %v1337 = vmul.f32 %v1111, %v1273
        %v1338 = vmul.f32 %v1113, %v1275
        %v1339 = vmul.f32 %v1115, %v1275
        %1340 = vmatprep.subr.mxu0 0.0
        %1341 = vmatpush1.msra.mxu0 %v442
        %1342 = vmatprep.subr.mxu0 0.0
        %1343 = vmatpush1.msra.mxu0 %v443
        %1344 = vmatprep.subr.mxu0 0.0
        %1345 = vmatpush1.msra.mxu0 %v444
        %1346 = vmatprep.subr.mxu0 0.0
        %1347 = vmatpush1.msra.mxu0 %v445
        %1348 = vmatprep.subr.mxu0 0.0
        %1349 = vmatpush1.msra.mxu0 %v446
        %1350 = vmatprep.subr.mxu0 0.0
        %1351 = vmatpush1.msra.mxu0 %v447
        %1352 = vmatprep.subr.mxu0 0.0
        %1353 = vmatpush1.msra.mxu0 %v448
        %1354 = vmatprep.subr.mxu0 0.0
        %1355 = vmatpush1.msra.mxu0 %v449
        %1356 = vmatprep.subr.mxu0 0.0
        %1357 = vmatpush1.msra.mxu0 %v450
        %1358 = vmatprep.subr.mxu0 0.0
        %1359 = vmatpush1.msra.mxu0 %v451
        %1360 = vmatprep.subr.mxu0 0.0
        %1361 = vmatpush1.msra.mxu0 %v452
        %1362 = vmatprep.subr.mxu0 0.0
        %1363 = vmatpush1.msra.mxu0 %v453
        %1364 = vmatprep.subr.mxu0 0.0
        %1365 = vmatpush1.msra.mxu0 %v454
        %1366 = vmatprep.subr.mxu0 0.0
        %1367 = vmatpush1.msra.mxu0 %v455
        %1368 = vmatprep.subr.mxu0 0.0
        %1369 = vmatpush1.msra.mxu0 %v456
        %1370 = vmatprep.subr.mxu0 0.0
        %1371 = vmatpush1.msra.mxu0 %v457
        %1372 = vmatprep.subr.mxu0 0.0
        %1373 = vmatpush1.msra.mxu0 %v458
        %1374 = vmatprep.subr.mxu0 0.0
        %1375 = vmatpush1.msra.mxu0 %v459
        %1376 = vmatprep.subr.mxu0 0.0
        %1377 = vmatpush1.msra.mxu0 %v460
        %1378 = vmatprep.subr.mxu0 0.0
        %1379 = vmatpush1.msra.mxu0 %v461
        %1380 = vmatprep.subr.mxu0 0.0
        %1381 = vmatpush1.msra.mxu0 %v462
        %1382 = vmatprep.subr.mxu0 0.0
        %1383 = vmatpush1.msra.mxu0 %v463
        %1384 = vmatprep.subr.mxu0 0.0
        %1385 = vmatpush1.msra.mxu0 %v464
        %1386 = vmatprep.subr.mxu0 0.0
        %1387 = vmatpush1.msra.mxu0 %v465
        %1388 = vmatprep.subr.mxu0 0.0
        %1389 = vmatpush1.msra.mxu0 %v466
        %1390 = vmatprep.subr.mxu0 0.0
        %1391 = vmatpush1.msra.mxu0 %v467
        %1392 = vmatprep.subr.mxu0 0.0
        %1393 = vmatpush1.msra.mxu0 %v468
        %1394 = vmatprep.subr.mxu0 0.0
        %1395 = vmatpush1.msra.mxu0 %v469
        %1396 = vmatprep.subr.mxu0 0.0
        %1397 = vmatpush1.msra.mxu0 %v470
        %1398 = vmatprep.subr.mxu0 0.0
        %1399 = vmatpush1.msra.mxu0 %v471
        %1400 = vmatprep.subr.mxu0 0.0
        %1401 = vmatpush1.msra.mxu0 %v472
        %1402 = vmatprep.subr.mxu0 0.0
        %1403 = vmatpush1.msra.mxu0 %v473
        %1404 = vmatprep.mubr.f32.mxu0 %v1277
        %1405 = vmatmul.mubr.f32.gmra.mrb[0].mxu0 %v1276
        %v1406 = vpop.f32.mrb[0].mxu0
        %v1407 = vadd.f32 0.0, %v1406
        %v1408 = vpop.f32.mrb[0].mxu0
        %1409 = vmatprep.mubr.f32.mxu0 %v1279
        %1410 = vmatmul.mubr.f32.gmra.mrb[0].mxu0 %v1278
        %v1411 = vpop.f32.mrb[0].mxu0
        %v1412 = vadd.f32 0.0, %v1411
        %v1413 = vpop.f32.mrb[0].mxu0
        %1414 = vmatprep.mubr.f32.mxu0 %v1281
        %1415 = vmatmul.mubr.f32.gmra.mrb[0].mxu0 %v1280
        %v1416 = vpop.f32.mrb[0].mxu0
        %v1417 = vadd.f32 0.0, %v1416
        %v1418 = vpop.f32.mrb[0].mxu0
        %1419 = vmatprep.mubr.f32.mxu0 %v1283
        %1420 = vmatmul.mubr.f32.gmra.mrb[0].mxu0 %v1282
        %v1421 = vpop.f32.mrb[0].mxu0
        %v1422 = vadd.f32 0.0, %v1421
        %v1423 = vpop.f32.mrb[0].mxu0
        %1424 = vmatprep.mubr.f32.mxu0 %v1285
        %1425 = vmatmul.mubr.f32.gmra.mrb[0].mxu0 %v1284
        %v1426 = vpop.f32.mrb[0].mxu0
        %v1427 = vadd.f32 0.0, %v1426
        %v1428 = vpop.f32.mrb[0].mxu0
        %1429 = vmatprep.mubr.f32.mxu0 %v1287
        %1430 = vmatmul.mubr.f32.gmra.mrb[0].mxu0 %v1286
        %v1431 = vpop.f32.mrb[0].mxu0
        %v1432 = vadd.f32 0.0, %v1431
        %v1433 = vpop.f32.mrb[0].mxu0
        %1434 = vmatprep.mubr.f32.mxu0 %v1289
        %1435 = vmatmul.mubr.f32.gmra.mrb[0].mxu0 %v1288
        %v1436 = vpop.f32.mrb[0].mxu0
        %v1437 = vadd.f32 0.0, %v1436
        %v1438 = vpop.f32.mrb[0].mxu0
        %1439 = vmatprep.mubr.f32.mxu0 %v1291
        %1440 = vmatmul.mubr.f32.gmra.mrb[0].mxu0 %v1290
        %v1441 = vpop.f32.mrb[0].mxu0
        %v1442 = vadd.f32 0.0, %v1441
        %v1443 = vpop.f32.mrb[0].mxu0
        %1444 = vmatprep.mubr.f32.mxu0 %v1293
        %1445 = vmatmul.mubr.f32.gmra.mrb[0].mxu0 %v1292
        %v1446 = vpop.f32.mrb[0].mxu0
        %v1447 = vadd.f32 0.0, %v1446
        %v1448 = vpop.f32.mrb[0].mxu0
        %1449 = vmatprep.mubr.f32.mxu0 %v1295
        %1450 = vmatmul.mubr.f32.gmra.mrb[0].mxu0 %v1294
        %v1451 = vpop.f32.mrb[0].mxu0
        %v1452 = vadd.f32 0.0, %v1451
        %v1453 = vpop.f32.mrb[0].mxu0
        %1454 = vmatprep.mubr.f32.mxu0 %v1297
        %1455 = vmatmul.mubr.f32.gmra.mrb[0].mxu0 %v1296
        %v1456 = vpop.f32.mrb[0].mxu0
        %v1457 = vadd.f32 0.0, %v1456
        %v1458 = vpop.f32.mrb[0].mxu0
        %1459 = vmatprep.mubr.f32.mxu0 %v1299
        %1460 = vmatmul.mubr.f32.gmra.mrb[0].mxu0 %v1298
        %v1461 = vpop.f32.mrb[0].mxu0
        %v1462 = vadd.f32 0.0, %v1461
        %v1463 = vpop.f32.mrb[0].mxu0
        %1464 = vmatprep.mubr.f32.mxu0 %v1301
        %1465 = vmatmul.mubr.f32.gmra.mrb[0].mxu0 %v1300
        %v1466 = vpop.f32.mrb[0].mxu0
        %v1467 = vadd.f32 0.0, %v1466
        %v1468 = vpop.f32.mrb[0].mxu0
        %1469 = vmatprep.mubr.f32.mxu0 %v1303
        %1470 = vmatmul.mubr.f32.gmra.mrb[0].mxu0 %v1302
        %v1471 = vpop.f32.mrb[0].mxu0
        %v1472 = vadd.f32 0.0, %v1471
        %v1473 = vpop.f32.mrb[0].mxu0
        %1474 = vmatprep.mubr.f32.mxu0 %v1305
        %1475 = vmatmul.mubr.f32.gmra.mrb[0].mxu0 %v1304
        %v1476 = vpop.f32.mrb[0].mxu0
        %v1477 = vadd.f32 0.0, %v1476
        %v1478 = vpop.f32.mrb[0].mxu0
        %1479 = vmatprep.mubr.f32.mxu0 %v1307
        %1480 = vmatmul.mubr.f32.gmra.mrb[0].mxu0 %v1306
        %v1481 = vpop.f32.mrb[0].mxu0
        %v1482 = vadd.f32 0.0, %v1481
        %v1483 = vpop.f32.mrb[0].mxu0
        %1484 = vdwg.mxu0
        %1485 = vmatprep.subr.mxu0 0.0
        %1486 = vmatpush1.msra.mxu0 %v474
        %1487 = vmatprep.subr.mxu0 0.0
        %1488 = vmatpush1.msra.mxu0 %v475
        %1489 = vmatprep.subr.mxu0 0.0
        %1490 = vmatpush1.msra.mxu0 %v476
        %1491 = vmatprep.subr.mxu0 0.0
        %1492 = vmatpush1.msra.mxu0 %v477
        %1493 = vmatprep.subr.mxu0 0.0
        %1494 = vmatpush1.msra.mxu0 %v478
        %1495 = vmatprep.subr.mxu0 0.0
        %1496 = vmatpush1.msra.mxu0 %v479
        %1497 = vmatprep.subr.mxu0 0.0
        %1498 = vmatpush1.msra.mxu0 %v480
        %1499 = vmatprep.subr.mxu0 0.0
        %1500 = vmatpush1.msra.mxu0 %v481
        %1501 = vmatprep.subr.mxu0 0.0
        %1502 = vmatpush1.msra.mxu0 %v482
        %1503 = vmatprep.subr.mxu0 0.0
        %1504 = vmatpush1.msra.mxu0 %v483
        %1505 = vmatprep.subr.mxu0 0.0
        %1506 = vmatpush1.msra.mxu0 %v484
        %1507 = vmatprep.subr.mxu0 0.0
        %1508 = vmatpush1.msra.mxu0 %v485
        %1509 = vmatprep.subr.mxu0 0.0
        %1510 = vmatpush1.msra.mxu0 %v486
        %1511 = vmatprep.subr.mxu0 0.0
        %1512 = vmatpush1.msra.mxu0 %v487
        %1513 = vmatprep.subr.mxu0 0.0
        %1514 = vmatpush1.msra.mxu0 %v488
        %1515 = vmatprep.subr.mxu0 0.0
        %1516 = vmatpush1.msra.mxu0 %v489
        %1517 = vmatprep.subr.mxu0 0.0
        %1518 = vmatpush1.msra.mxu0 %v490
        %1519 = vmatprep.subr.mxu0 0.0
        %1520 = vmatpush1.msra.mxu0 %v491
        %1521 = vmatprep.subr.mxu0 0.0
        %1522 = vmatpush1.msra.mxu0 %v492
        %1523 = vmatprep.subr.mxu0 0.0
        %1524 = vmatpush1.msra.mxu0 %v493
        %1525 = vmatprep.subr.mxu0 0.0
        %1526 = vmatpush1.msra.mxu0 %v494
        %1527 = vmatprep.subr.mxu0 0.0
        %1528 = vmatpush1.msra.mxu0 %v495
        %1529 = vmatprep.subr.mxu0 0.0
        %1530 = vmatpush1.msra.mxu0 %v496
        %1531 = vmatprep.subr.mxu0 0.0
        %1532 = vmatpush1.msra.mxu0 %v497
        %1533 = vmatprep.subr.mxu0 0.0
        %1534 = vmatpush1.msra.mxu0 %v498
        %1535 = vmatprep.subr.mxu0 0.0
        %1536 = vmatpush1.msra.mxu0 %v499
        %1537 = vmatprep.subr.mxu0 0.0
        %1538 = vmatpush1.msra.mxu0 %v500
        %1539 = vmatprep.subr.mxu0 0.0
        %1540 = vmatpush1.msra.mxu0 %v501
        %1541 = vmatprep.subr.mxu0 0.0
        %1542 = vmatpush1.msra.mxu0 %v502
        %1543 = vmatprep.subr.mxu0 0.0
        %1544 = vmatpush1.msra.mxu0 %v503
        %1545 = vmatprep.subr.mxu0 0.0
        %1546 = vmatpush1.msra.mxu0 %v504
        %1547 = vmatprep.subr.mxu0 0.0
        %1548 = vmatpush1.msra.mxu0 %v505
        %1549 = vmatprep.mubr.f32.mxu0 %v1309
        %1550 = vmatmul.mubr.f32.gmra.mrb[0].mxu0 %v1308
        %v1551 = vpop.f32.mrb[0].mxu0
        %v1552 = vadd.f32 0.0, %v1551
        %v1553 = vpop.f32.mrb[0].mxu0
        %1554 = vmatprep.mubr.f32.mxu0 %v1311
        %1555 = vmatmul.mubr.f32.gmra.mrb[0].mxu0 %v1310
        %v1556 = vpop.f32.mrb[0].mxu0
        %v1557 = vadd.f32 0.0, %v1556
        %v1558 = vpop.f32.mrb[0].mxu0
        %1559 = vmatprep.mubr.f32.mxu0 %v1313
        %1560 = vmatmul.mubr.f32.gmra.mrb[0].mxu0 %v1312
        %v1561 = vpop.f32.mrb[0].mxu0
        %v1562 = vadd.f32 0.0, %v1561
        %v1563 = vpop.f32.mrb[0].mxu0
        %1564 = vmatprep.mubr.f32.mxu0 %v1315
        %1565 = vmatmul.mubr.f32.gmra.mrb[0].mxu0 %v1314
        %v1566 = vpop.f32.mrb[0].mxu0
        %v1567 = vadd.f32 0.0, %v1566
        %v1568 = vpop.f32.mrb[0].mxu0
        %1569 = vmatprep.mubr.f32.mxu0 %v1317
        %1570 = vmatmul.mubr.f32.gmra.mrb[0].mxu0 %v1316
        %v1571 = vpop.f32.mrb[0].mxu0
        %v1572 = vadd.f32 0.0, %v1571
        %v1573 = vpop.f32.mrb[0].mxu0
        %1574 = vmatprep.mubr.f32.mxu0 %v1319
        %1575 = vmatmul.mubr.f32.gmra.mrb[0].mxu0 %v1318
        %v1576 = vpop.f32.mrb[0].mxu0
        %v1577 = vadd.f32 0.0, %v1576
        %v1578 = vpop.f32.mrb[0].mxu0
        %1579 = vmatprep.mubr.f32.mxu0 %v1321
        %1580 = vmatmul.mubr.f32.gmra.mrb[0].mxu0 %v1320
        %v1581 = vpop.f32.mrb[0].mxu0
        %v1582 = vadd.f32 0.0, %v1581
        %v1583 = vpop.f32.mrb[0].mxu0
        %1584 = vmatprep.mubr.f32.mxu0 %v1323
        %1585 = vmatmul.mubr.f32.gmra.mrb[0].mxu0 %v1322
        %v1586 = vpop.f32.mrb[0].mxu0
        %v1587 = vadd.f32 0.0, %v1586
        %v1588 = vpop.f32.mrb[0].mxu0
        %1589 = vmatprep.mubr.f32.mxu0 %v1325
        %1590 = vmatmul.mubr.f32.gmra.mrb[0].mxu0 %v1324
        %v1591 = vpop.f32.mrb[0].mxu0
        %v1592 = vadd.f32 0.0, %v1591
        %v1593 = vpop.f32.mrb[0].mxu0
        %1594 = vmatprep.mubr.f32.mxu0 %v1327
        %1595 = vmatmul.mubr.f32.gmra.mrb[0].mxu0 %v1326
        %v1596 = vpop.f32.mrb[0].mxu0
        %v1597 = vadd.f32 0.0, %v1596
        %v1598 = vpop.f32.mrb[0].mxu0
        %1599 = vmatprep.mubr.f32.mxu0 %v1329
        %1600 = vmatmul.mubr.f32.gmra.mrb[0].mxu0 %v1328
        %v1601 = vpop.f32.mrb[0].mxu0
        %v1602 = vadd.f32 0.0, %v1601
        %v1603 = vpop.f32.mrb[0].mxu0
        %1604 = vmatprep.mubr.f32.mxu0 %v1331
        %1605 = vmatmul.mubr.f32.gmra.mrb[0].mxu0 %v1330
        %v1606 = vpop.f32.mrb[0].mxu0
        %v1607 = vadd.f32 0.0, %v1606
        %v1608 = vpop.f32.mrb[0].mxu0
        %1609 = vmatprep.mubr.f32.mxu0 %v1333
        %1610 = vmatmul.mubr.f32.gmra.mrb[0].mxu0 %v1332
        %v1611 = vpop.f32.mrb[0].mxu0
        %v1612 = vadd.f32 0.0, %v1611
        %v1613 = vpop.f32.mrb[0].mxu0
        %1614 = vmatprep.mubr.f32.mxu0 %v1335
        %1615 = vmatmul.mubr.f32.gmra.mrb[0].mxu0 %v1334
        %v1616 = vpop.f32.mrb[0].mxu0
        %v1617 = vadd.f32 0.0, %v1616
        %v1618 = vpop.f32.mrb[0].mxu0
        %1619 = vmatprep.mubr.f32.mxu0 %v1337
        %1620 = vmatmul.mubr.f32.gmra.mrb[0].mxu0 %v1336
        %v1621 = vpop.f32.mrb[0].mxu0
        %v1622 = vadd.f32 0.0, %v1621
        %v1623 = vpop.f32.mrb[0].mxu0
        %1624 = vmatprep.mubr.f32.mxu0 %v1339
        %1625 = vmatmul.mubr.f32.gmra.mrb[0].mxu0 %v1338
        %v1626 = vpop.f32.mrb[0].mxu0
        %v1627 = vadd.f32 0.0, %v1626
        %v1628 = vpop.f32.mrb[0].mxu0
        %1629 = vdwg.mxu0
        %1630 = vst [vmem:[%s307] sm:$0xff] %v1407
        %1631 = vst [vmem:[%s307 + $0x8] sm:$0xff] %v1412
        %1632 = vst [vmem:[%s307 + $0x10] sm:$0xff] %v1417
        %1633 = vst [vmem:[%s307 + $0x18] sm:$0xff] %v1422
        %1634 = vst [vmem:[%s307 + $0x20] sm:$0xff] %v1427
        %1635 = vst [vmem:[%s307 + $0x28] sm:$0xff] %v1432
        %1636 = vst [vmem:[%s307 + $0x30] sm:$0xff] %v1437
        %1637 = vst [vmem:[%s307 + $0x38] sm:$0xff] %v1442
        %1638 = vst [vmem:[%s307 + $0x40] sm:$0xff] %v1447
        %1639 = vst [vmem:[%s307 + $0x48] sm:$0xff] %v1452
        %1640 = vst [vmem:[%s307 + $0x50] sm:$0xff] %v1457
        %1641 = vst [vmem:[%s307 + $0x58] sm:$0xff] %v1462
        %1642 = vst [vmem:[%s307 + $0x60] sm:$0xff] %v1467
        %1643 = vst [vmem:[%s307 + $0x68] sm:$0xff] %v1472
        %1644 = vst [vmem:[%s307 + $0x70] sm:$0xff] %v1477
        %1645 = vst [vmem:[%s307 + $0x78] sm:$0xff] %v1482
        %1646 = vst [vmem:[%s307 + $0x80] sm:$0xff] %v1552
        %1647 = vst [vmem:[%s307 + $0x88] sm:$0xff] %v1557
        %1648 = vst [vmem:[%s307 + $0x90] sm:$0xff] %v1562
        %1649 = vst [vmem:[%s307 + $0x98] sm:$0xff] %v1567
        %1650 = vst [vmem:[%s307 + $0xa0] sm:$0xff] %v1572
        %1651 = vst [vmem:[%s307 + $0xa8] sm:$0xff] %v1577
        %1652 = vst [vmem:[%s307 + $0xb0] sm:$0xff] %v1582
        %1653 = vst [vmem:[%s307 + $0xb8] sm:$0xff] %v1587
        %1654 = vst [vmem:[%s307 + $0xc0] sm:$0xff] %v1592
        %1655 = vst [vmem:[%s307 + $0xc8] sm:$0xff] %v1597
        %1656 = vst [vmem:[%s307 + $0xd0] sm:$0xff] %v1602
        %1657 = vst [vmem:[%s307 + $0xd8] sm:$0xff] %v1607
        %1658 = vst [vmem:[%s307 + $0xe0] sm:$0xff] %v1612
        %1659 = vst [vmem:[%s307 + $0xe8] sm:$0xff] %v1617
        %1660 = vst [vmem:[%s307 + $0xf0] sm:$0xff] %v1622
        %1661 = vst [vmem:[%s307 + $0xf8] sm:$0xff] %v1627
        %s1662 = sand.u32 %s146, 1
        %s1663 = scalar_lea.sflag [#allocation5], %s1662
        %s1664 = sand.u32 %s146, 1
        %s1665 = smul.addr %s1664, 256
        %s1666 = scalar_lea.vmem [#allocation9], %s1665
        // Predicated region
        $region49: #{tpu_custom_call.1} parent=35 // pred_check
          %p1667 = pneg %p156
        $region50: #{tpu_custom_call.1} parent=35 // pred_check_branch
          %1669 = sbr.rel (%p1667) target = $region52
        $region51: #{tpu_custom_call.1} parent=35 // pred_region
          #allocation13 [shape = 'u32[6]{0}', space=smem, size = 0x18, scoped, tag = 'DMA stride descriptor']
          %s1670 = smul.u32 2, %s27
          %s1671 = smul.u32 16, %s28
          %s1673 = ssub.s32 4096, 4096
          %1674 = vsyncadd %s1663, %s1673
          %s1675 = smul.addr %s1670, 32
          %s1676 = sadd.s32 %s1671, %s1675
          %s1677 = smul.addr %s1676, 128
          %s1678 = scalar_lea.hbm %s4, %s1677
          %s1680 = sshll.u32 1, 14
          %s1681 = sxor.u32 4294967295, %s1680
          %s1684 = sshll.u32 7, 18
          %s1685 = sxor.u32 4294967295, %s1684
          %s1686 = sand.u32 0, %s1685
          %s1688 = sor.u32 %s1686, 0
          %s1690 = sshll.u32 3, 24
          %s1691 = sxor.u32 4294967295, %s1690
          %s1692 = sand.u32 %s1688, %s1691
          %s1694 = sor.u32 %s1692, 0
          %s1695 = sshll.u32 %s1666, 4
          %s1696 = int_to_ptr.vmem [resolvable:$true] %s1695
          %1702 = sst [smem:[#allocation13]] 2048
          %s1703 = scalar_lea.smem [#allocation13], 1
          %1704 = sst [smem:[%s1703]] 4096
          %s1705 = scalar_lea.smem [#allocation13], 2
          %1706 = sst [smem:[%s1705]] 16
          %s1707 = scalar_lea.smem [#allocation13], 3
          %1708 = sst [smem:[%s1707]] 128
          %s1709 = scalar_lea.smem [#allocation13], 4
          %1710 = sst [smem:[%s1709]] 128
          %s1711 = scalar_lea.smem [#allocation13], 5
          %1712 = sst [smem:[%s1711]] 8
          %1714 = dma.general %s1696, 4096, %s1678, %s1663, [#allocation12], [#allocation13], %s1694, 0
        $region52: #{tpu_custom_call.1} parent=35 // pred_fallthru
          _
      $region36: #{tpu_custom_call.1} parent=5 // pred_fallthru
        _
      %p1715 = scmp.le.s32.totalorder 2, %s18
      // Predicated region
      $region53: #{tpu_custom_call.1} parent=5 // pred_check
        %p1716 = pneg %p1715
      $region54: #{tpu_custom_call.1} parent=5 // pred_check_branch
        %1718 = sbr.rel (%p1716) target = $region56
      $region55: #{tpu_custom_call.1} parent=5 // pred_region
        %s1719 = ssub.s32 %s18, 2
        // Predicated region
        $region57: #{tpu_custom_call.1} parent=55 // pred_check
          %p1720 = pneg %p162
        $region58: #{tpu_custom_call.1} parent=55 // pred_check_branch
          %1722 = sbr.rel (%p1720) target = $region60
        $region59: #{tpu_custom_call.1} parent=55 // pred_region
          %s1723 = sand.u32 %s147, 1
          %s1724 = scalar_lea.sflag [#allocation5], %s1723
          %s1725 = sand.u32 %s147, 1
          %s1726 = smul.addr %s1725, 256
          %s1727 = scalar_lea.vmem [#allocation9], %s1726
          %1728 = dma.done %s1724, 4096
        $region60: #{tpu_custom_call.1} parent=55 // pred_fallthru
          _
      $region56: #{tpu_custom_call.1} parent=5 // pred_fallthru
        _
    $region6: #{tpu_custom_call.1} parent=1 // loop_footer
      %s22 = sadd.s32 1, %s18
    $region7: #{tpu_custom_call.1} parent=1 // loop_footer_branch
      %17 = sbr.rel target = $region3
    $region8: #{tpu_custom_call.1} parent=1 // loop_exit
      _
    %1729 = vsyncpa [#allocation4], 1
    %s1730 = scalar_lea.sflag [#allocation4], 1
    %1731 = vsyncpa %s1730, 1
    %1732 = vsyncpa [#allocation7], 1
    %1733 = vsyncpa [#allocation5], 1
    %s1734 = scalar_lea.sflag [#allocation5], 1
    %1735 = vsyncpa %s1734, 1

</llo_original>
